<compile_context>
chip_gen: v5e
topology: v5e:2x2
jax: 0.10.0
libtpu: 0.0.40
codegen_flags: <defaults>
</compile_context>

<pallas_src>
import jax
import jax.numpy as jnp
from jax.experimental import pallas as pl
from jax.experimental.pallas import tpu as pltpu

# ---- small synthetic T5 config -------------------------------------------
D_MODEL = 32
N_HEADS = 4
D_KV = 8
INNER = N_HEADS * D_KV
D_FF = 64
N_LAYERS = 2
VOCAB = 128
NUM_BUCKETS = 8
MAX_DISTANCE = 16
EPS = 1e-6
NEG_INF = -1e9


# ---- fused encoder kernel --------------------------------------------------
def _t5_encoder_kernel(emb_ref, amask_ref, pos_ref, wqkv_ref, wo_ref,
                       wi_ref, wof_ref, fln_ref, out_ref):
    """One grid step = one batch element; the full layer stack runs in-kernel.

    Weight refs hold ALL layers (constant index_map -> DMA'd once, resident
    in VMEM).  Hidden state is a plain value carried through the unrolled
    layer loop; no scratch / HBM round trips between sub-blocks.
    """
    x = emb_ref[0].astype(jnp.float32)                      # (S, D) f32

    # Position bias + additive padding mask, combined ONCE (shared by all
    # layers -- T5 reuses layer-0's relative bias).  (H,S,S) f32.
    bias = pos_ref[...].astype(jnp.float32) + amask_ref[0]  # (H,S,S)+(1,S)

    for l in range(N_LAYERS):                               # static unroll
        # ---------- self-attention sub-block (ln1 folded into wqkv) ----------
        var = jnp.mean(x * x, axis=-1, keepdims=True)
        normed = (x * jax.lax.rsqrt(var + EPS))             # T5LayerNorm (RMS)
        qkv = jnp.dot(normed.astype(jnp.bfloat16), wqkv_ref[l],
                      preferred_element_type=jnp.float32)   # (S, 3*INNER) f32

        ctx_parts = []
        for h in range(N_HEADS):
            q = qkv[:, h * D_KV:(h + 1) * D_KV]                          # (S, dk)
            k = qkv[:, INNER + h * D_KV:INNER + (h + 1) * D_KV]          # (S, dk)
            v = qkv[:, 2 * INNER + h * D_KV:2 * INNER + (h + 1) * D_KV]  # (S, dk)

            # q @ k.T without an explicit transpose (contract last dims).
            scores = jax.lax.dot_general(
                q, k, (((1,), (1,)), ((), ())),
                preferred_element_type=jnp.float32)          # (S, S)
            scores = scores + bias[h]                        # T5: no 1/sqrt(d)

            m = jnp.max(scores, axis=-1, keepdims=True)
            p = jnp.exp(scores - m)
            denom = jnp.sum(p, axis=-1, keepdims=True)
            attn = p / denom                                 # exact divide

            ctx_parts.append(jnp.dot(attn.astype(jnp.bfloat16),
                                     v.astype(jnp.bfloat16),
                                     preferred_element_type=jnp.float32))

        # one lane-dense (S, INNER) buffer -> ONE output-projection matmul
        ctx = jnp.concatenate(ctx_parts, axis=-1).astype(jnp.bfloat16)   # (S, INNER)
        attn_out = jnp.dot(ctx, wo_ref[l],
                           preferred_element_type=jnp.float32)           # (S, D)
        x = x + attn_out                                     # residual (fused)

        # ---------- feed-forward sub-block (DenseReluDense; ln2 folded into wi)
        var2 = jnp.mean(x * x, axis=-1, keepdims=True)
        normed2 = (x * jax.lax.rsqrt(var2 + EPS))
        hdn = jnp.maximum(
            jnp.dot(normed2.astype(jnp.bfloat16), wi_ref[l],
                    preferred_element_type=jnp.float32), 0.0)            # (S, D_FF)
        ff = jnp.dot(hdn.astype(jnp.bfloat16), wof_ref[l],
                     preferred_element_type=jnp.float32)                 # (S, D)
        x = x + ff                                           # residual (fused)

    # Final T5LayerNorm, write the output block.
    var3 = jnp.mean(x * x, axis=-1, keepdims=True)
    y = x * jax.lax.rsqrt(var3 + EPS) * fln_ref[...]
    out_ref[0] = y.astype(out_ref.dtype)


# ---- T5 glue (plain JAX): relative position bias, parameter setup ---------
def _relative_position_bucket(relative_position, num_buckets, max_distance):
    # bidirectional bucketing (encoder), mirrors HF T5Attention._relative_position_bucket
    num_buckets //= 2
    relative_buckets = (relative_position > 0).astype(jnp.int32) * num_buckets
    n = jnp.abs(relative_position)
    max_exact = num_buckets // 2
    is_small = n < max_exact
    # jnp.maximum(n, 1) guards log(0) on the diagonal (masked by `is_small`).
    val_if_large = max_exact + (
        jnp.log(jnp.maximum(n, 1).astype(jnp.float32) / max_exact)
        / jnp.log(max_distance / max_exact)
        * (num_buckets - max_exact)
    ).astype(jnp.int32)
    val_if_large = jnp.minimum(val_if_large, num_buckets - 1)
    relative_buckets += jnp.where(is_small, n, val_if_large)
    return relative_buckets


def compute_position_bias(rel_attn_bias, seq_len):
    ctx = jnp.arange(seq_len, dtype=jnp.int32)[:, None]
    mem = jnp.arange(seq_len, dtype=jnp.int32)[None, :]
    rel_pos = mem - ctx                                   # (S, S)
    buckets = _relative_position_bucket(rel_pos, NUM_BUCKETS, MAX_DISTANCE)
    values = rel_attn_bias[buckets]                       # (S, S, H)
    return jnp.transpose(values, (2, 0, 1))               # (H, S, S)


def init_params(key):
    keys = jax.random.split(key, 3 + 8 * N_LAYERS)
    it = iter(keys)
    scale = 0.02
    params = {
        "embed": jax.random.normal(next(it), (VOCAB, D_MODEL), jnp.float32) * scale,
        "rel_attn_bias": jax.random.normal(next(it), (NUM_BUCKETS, N_HEADS), jnp.float32) * scale,
        "final_ln": 1.0 + 0.1 * jax.random.normal(next(it), (D_MODEL,), jnp.float32),
        "layers": [],
    }
    for _ in range(N_LAYERS):
        layer = {
            "ln1": 1.0 + 0.1 * jax.random.normal(next(it), (D_MODEL,), jnp.float32),
            "wq": jax.random.normal(next(it), (D_MODEL, INNER), jnp.float32) * scale,
            "wk": jax.random.normal(next(it), (D_MODEL, INNER), jnp.float32) * scale,
            "wv": jax.random.normal(next(it), (D_MODEL, INNER), jnp.float32) * scale,
            "wo": jax.random.normal(next(it), (INNER, D_MODEL), jnp.float32) * scale,
            "ln2": 1.0 + 0.1 * jax.random.normal(next(it), (D_MODEL,), jnp.float32),
            "wi": jax.random.normal(next(it), (D_MODEL, D_FF), jnp.float32) * scale,
            "wo_ff": jax.random.normal(next(it), (D_FF, D_MODEL), jnp.float32) * scale,
        }
        params["layers"].append(layer)
    return params


def prepare_fused_params(params):
    """Stack per-layer weights, fold the RMSNorm scale vectors into the
    following projections (ln1 -> wqkv, ln2 -> wi) -- mathematically identical
    -- and store the stacked weights in bf16 (MXU-native; halves weight DMA).
    Accumulation stays f32 inside the kernel."""
    wqkv, wo, wi, wof = [], [], [], []
    for layer in params["layers"]:
        qkv = jnp.concatenate([layer["wq"], layer["wk"], layer["wv"]], axis=1)
        wqkv.append(qkv * layer["ln1"][:, None])
        wo.append(layer["wo"])
        wi.append(layer["wi"] * layer["ln2"][:, None])
        wof.append(layer["wo_ff"])
    return {
        "embed": params["embed"],
        "rel_attn_bias": params["rel_attn_bias"],
        "final_ln": params["final_ln"].reshape(1, D_MODEL),
        "wqkv": jnp.stack(wqkv).astype(jnp.bfloat16),   # (L, D, 3*INNER)
        "wo": jnp.stack(wo).astype(jnp.bfloat16),       # (L, INNER, D)
        "wi": jnp.stack(wi).astype(jnp.bfloat16),       # (L, D, D_FF)
        "wof": jnp.stack(wof).astype(jnp.bfloat16),     # (L, D_FF, D)
    }


def t5_encoder_forward(fused, input_ids, attention_mask):
    B, S = input_ids.shape
    L = fused["wqkv"].shape[0]
    assert L == N_LAYERS

    # TODO(synk): embedding gather + relative-position bucketing are one-time,
    # data-dependent gathers kept in plain JAX (no clean tiny-Pallas equivalent).
    x_emb = fused["embed"][input_ids]                                # (B, S, D)
    # additive key-padding mask precomputed once (hoisted out of the kernel)
    add_mask = ((1.0 - attention_mask.astype(jnp.float32))
                * NEG_INF).reshape(B, 1, S)                          # (B, 1, S) f32
    pos_bias = compute_position_bias(
        fused["rel_attn_bias"], S).astype(jnp.bfloat16)              # (H, S, S)

    kernel = pl.pallas_call(
        _t5_encoder_kernel,
        out_shape=jax.ShapeDtypeStruct((B, S, D_MODEL), jnp.float32),
        grid_spec=pltpu.PrefetchScalarGridSpec(
            num_scalar_prefetch=0,
            grid=(B,),
            in_specs=[
                pl.BlockSpec((1, S, D_MODEL), lambda b: (b, 0, 0)),            # embeddings
                pl.BlockSpec((1, 1, S), lambda b: (b, 0, 0)),                  # additive mask
                pl.BlockSpec((N_HEADS, S, S), lambda b: (0, 0, 0)),            # rel-pos bias (bf16)
                pl.BlockSpec((N_LAYERS, D_MODEL, 3 * INNER), lambda b: (0, 0, 0)),  # fused QKV (ln1 folded)
                pl.BlockSpec((N_LAYERS, INNER, D_MODEL), lambda b: (0, 0, 0)),      # attn out proj
                pl.BlockSpec((N_LAYERS, D_MODEL, D_FF), lambda b: (0, 0, 0)),       # FF wi (ln2 folded)
                pl.BlockSpec((N_LAYERS, D_FF, D_MODEL), lambda b: (0, 0, 0)),       # FF wo
                pl.BlockSpec((1, D_MODEL), lambda b: (0, 0)),                       # final LN weight
            ],
            out_specs=pl.BlockSpec((1, S, D_MODEL), lambda b: (b, 0, 0)),
        ),
        compiler_params=pltpu.CompilerParams(
            dimension_semantics=("parallel",)),
    )
    return kernel(x_emb, add_mask, pos_bias,
                  fused["wqkv"], fused["wo"], fused["wi"], fused["wof"],
                  fused["final_ln"])


class T5WrapperPallas:
    """Mirrors T5Wrapper.forward: returns last_hidden_state (detached == no grad here)."""

    def __init__(self, params):
        self.fused = prepare_fused_params(params)
        self._fwd = jax.jit(t5_encoder_forward)

    def __call__(self, input_ids, attention_mask):
        return self._fwd(self.fused, input_ids, attention_mask)


if __name__ == "__main__":
    key = jax.random.PRNGKey(0)
    pkey, idkey = jax.random.split(key)
    params = init_params(pkey)

    B, S = 2, 8
    input_ids = jax.random.randint(idkey, (B, S), 0, VOCAB, dtype=jnp.int32)
    # attention mask with some padding on the second sequence
    attention_mask = jnp.array([[1, 1, 1, 1, 1, 1, 1, 1],
                                [1, 1, 1, 1, 1, 0, 0, 0]], dtype=jnp.int32)

    model = T5WrapperPallas(params)
    out = model(input_ids, attention_mask)
    out = jax.block_until_ready(out)

    assert out.shape == (B, S, D_MODEL)
    assert out.dtype == jnp.float32
    assert bool(jnp.all(jnp.isfinite(out)))
    print("KERNEL_OK")
</pallas_src>

<mosaic_0001>
module attributes {stable_mosaic.version = 11 : i64} {
  func.func @_t5_encoder_kernel(%arg0: i32, %arg1: memref<1x8x32xf32, #tpu.memory_space<vmem>>, %arg2: memref<1x1x8xf32, #tpu.memory_space<vmem>>, %arg3: memref<4x8x8xbf16, #tpu.memory_space<vmem>>, %arg4: memref<2x32x96xbf16, #tpu.memory_space<vmem>>, %arg5: memref<2x32x32xbf16, #tpu.memory_space<vmem>>, %arg6: memref<2x32x64xbf16, #tpu.memory_space<vmem>>, %arg7: memref<2x64x32xbf16, #tpu.memory_space<vmem>>, %arg8: memref<1x32xf32, #tpu.memory_space<vmem>>, %arg9: memref<1x8x32xf32, #tpu.memory_space<vmem>>) attributes {dimension_semantics = [#tpu.dimension_semantics<parallel>], iteration_bounds = array<i64: 2>, scalar_prefetch = 0 : i64, scratch_operands = 0 : i64, tpu.core_type = #tpu.core_type<tc>, window_params = [{transform_indices = @transform_0, window_bounds = array<i64: 1, 8, 32>}, {transform_indices = @transform_1, window_bounds = array<i64: 1, 1, 8>}, {pipeline_mode = #tpu.pipeline_mode<synchronous>, transform_indices = @transform_2, window_bounds = array<i64: 4, 8, 8>}, {pipeline_mode = #tpu.pipeline_mode<synchronous>, transform_indices = @transform_3, window_bounds = array<i64: 2, 32, 96>}, {pipeline_mode = #tpu.pipeline_mode<synchronous>, transform_indices = @transform_4, window_bounds = array<i64: 2, 32, 32>}, {pipeline_mode = #tpu.pipeline_mode<synchronous>, transform_indices = @transform_5, window_bounds = array<i64: 2, 32, 64>}, {pipeline_mode = #tpu.pipeline_mode<synchronous>, transform_indices = @transform_6, window_bounds = array<i64: 2, 64, 32>}, {pipeline_mode = #tpu.pipeline_mode<synchronous>, transform_indices = @transform_7, window_bounds = array<i64: 1, 32>}, {transform_indices = @transform_8, window_bounds = array<i64: 1, 8, 32>}]} {
    %c0 = arith.constant 0 : index
    %c0_0 = arith.constant 0 : index
    %c0_1 = arith.constant 0 : index
    %0 = vector.load %arg1[%c0, %c0_0, %c0_1] : memref<1x8x32xf32, #tpu.memory_space<vmem>>, vector<1x8x32xf32>
    %1 = vector.shape_cast %0 : vector<1x8x32xf32> to vector<8x32xf32>
    %c0_2 = arith.constant 0 : index
    %c0_3 = arith.constant 0 : index
    %c0_4 = arith.constant 0 : index
    %2 = vector.load %arg3[%c0_2, %c0_3, %c0_4] : memref<4x8x8xbf16, #tpu.memory_space<vmem>>, vector<4x8x8xbf16>
    %3 = arith.extf %2 : vector<4x8x8xbf16> to vector<4x8x8xf32>
    %c0_5 = arith.constant 0 : index
    %c0_6 = arith.constant 0 : index
    %c0_7 = arith.constant 0 : index
    %4 = vector.load %arg2[%c0_5, %c0_6, %c0_7] : memref<1x1x8xf32, #tpu.memory_space<vmem>>, vector<1x1x8xf32>
    %5 = vector.shape_cast %4 : vector<1x1x8xf32> to vector<1x8xf32>
    %6 = vector.shape_cast %5 : vector<1x8xf32> to vector<1x1x8xf32>
    %7 = vector.broadcast %6 : vector<1x1x8xf32> to vector<4x8x8xf32>
    %8 = arith.addf %3, %7 : vector<4x8x8xf32>
    %9 = arith.mulf %1, %1 : vector<8x32xf32>
    %cst = arith.constant dense<0.000000e+00> : vector<8xf32>
    %10 = vector.multi_reduction <add>, %9, %cst [1] : vector<8x32xf32> to vector<8xf32>
    %11 = vector.shape_cast %10 : vector<8xf32> to vector<8x1xf32>
    %cst_8 = arith.constant 3.200000e+01 : f32
    %12 = vector.broadcast %cst_8 : f32 to vector<8x1xf32>
    %13 = arith.divf %11, %12 : vector<8x1xf32>
    %cst_9 = arith.constant 9.99999997E-7 : f32
    %14 = vector.broadcast %cst_9 : f32 to vector<8x1xf32>
    %15 = arith.addf %13, %14 : vector<8x1xf32>
    %16 = math.rsqrt %15 : vector<8x1xf32>
    %17 = vector.broadcast %16 : vector<8x1xf32> to vector<8x32xf32>
    %18 = arith.mulf %1, %17 : vector<8x32xf32>
    %19 = arith.truncf %18 : vector<8x32xf32> to vector<8x32xbf16>
    %c0_10 = arith.constant 0 : index
    %c0_11 = arith.constant 0 : index
    %c0_12 = arith.constant 0 : index
    %20 = vector.load %arg4[%c0_10, %c0_11, %c0_12] : memref<2x32x96xbf16, #tpu.memory_space<vmem>>, vector<1x32x96xbf16>
    %21 = vector.shape_cast %20 : vector<1x32x96xbf16> to vector<32x96xbf16>
    %cst_13 = arith.constant dense<0.000000e+00> : vector<8x96xf32>
    %22 = tpu.matmul %19, %21, %cst_13 {dimension_numbers = #tpu.dot_dimension_numbers<[1], [0], [0], [1], [0, 0, 1, 1], [], []>} : vector<8x32xbf16>, vector<32x96xbf16>, vector<8x96xf32> -> vector<8x96xf32>
    %23 = vector.extract_strided_slice %22 {offsets = [0, 0], sizes = [8, 8], strides = [1, 1]} : vector<8x96xf32> to vector<8x8xf32>
    %24 = vector.extract_strided_slice %22 {offsets = [0, 32], sizes = [8, 8], strides = [1, 1]} : vector<8x96xf32> to vector<8x8xf32>
    %25 = vector.extract_strided_slice %22 {offsets = [0, 64], sizes = [8, 8], strides = [1, 1]} : vector<8x96xf32> to vector<8x8xf32>
    %cst_14 = arith.constant dense<0.000000e+00> : vector<8x8xf32>
    %26 = tpu.matmul %23, %24, %cst_14 {dimension_numbers = #tpu.dot_dimension_numbers<[1], [1], [0], [0], [0, 0, 1, 0], [], []>} : vector<8x8xf32>, vector<8x8xf32>, vector<8x8xf32> -> vector<8x8xf32>
    %27 = vector.extract_strided_slice %8 {offsets = [0, 0, 0], sizes = [1, 8, 8], strides = [1, 1, 1]} : vector<4x8x8xf32> to vector<1x8x8xf32>
    %28 = vector.shape_cast %27 : vector<1x8x8xf32> to vector<8x8xf32>
    %29 = arith.addf %26, %28 : vector<8x8xf32>
    %cst_15 = arith.constant dense<0xFF800000> : vector<8xf32>
    %30 = vector.multi_reduction <maximumf>, %29, %cst_15 [1] : vector<8x8xf32> to vector<8xf32>
    %31 = vector.shape_cast %30 : vector<8xf32> to vector<8x1xf32>
    %32 = vector.broadcast %31 : vector<8x1xf32> to vector<8x8xf32>
    %33 = arith.subf %29, %32 : vector<8x8xf32>
    %34 = math.exp %33 : vector<8x8xf32>
    %cst_16 = arith.constant dense<0.000000e+00> : vector<8xf32>
    %35 = vector.multi_reduction <add>, %34, %cst_16 [1] : vector<8x8xf32> to vector<8xf32>
    %36 = vector.shape_cast %35 : vector<8xf32> to vector<8x1xf32>
    %37 = vector.broadcast %36 : vector<8x1xf32> to vector<8x8xf32>
    %38 = arith.divf %34, %37 : vector<8x8xf32>
    %39 = arith.truncf %38 : vector<8x8xf32> to vector<8x8xbf16>
    %40 = arith.truncf %25 : vector<8x8xf32> to vector<8x8xbf16>
    %cst_17 = arith.constant dense<0.000000e+00> : vector<8x8xf32>
    %41 = tpu.matmul %39, %40, %cst_17 {dimension_numbers = #tpu.dot_dimension_numbers<[1], [0], [0], [1], [0, 0, 1, 1], [], []>} : vector<8x8xbf16>, vector<8x8xbf16>, vector<8x8xf32> -> vector<8x8xf32>
    %42 = vector.extract_strided_slice %22 {offsets = [0, 8], sizes = [8, 8], strides = [1, 1]} : vector<8x96xf32> to vector<8x8xf32>
    %43 = vector.extract_strided_slice %22 {offsets = [0, 40], sizes = [8, 8], strides = [1, 1]} : vector<8x96xf32> to vector<8x8xf32>
    %44 = vector.extract_strided_slice %22 {offsets = [0, 72], sizes = [8, 8], strides = [1, 1]} : vector<8x96xf32> to vector<8x8xf32>
    %cst_18 = arith.constant dense<0.000000e+00> : vector<8x8xf32>
    %45 = tpu.matmul %42, %43, %cst_18 {dimension_numbers = #tpu.dot_dimension_numbers<[1], [1], [0], [0], [0, 0, 1, 0], [], []>} : vector<8x8xf32>, vector<8x8xf32>, vector<8x8xf32> -> vector<8x8xf32>
    %46 = vector.extract_strided_slice %8 {offsets = [1, 0, 0], sizes = [1, 8, 8], strides = [1, 1, 1]} : vector<4x8x8xf32> to vector<1x8x8xf32>
    %47 = vector.shape_cast %46 : vector<1x8x8xf32> to vector<8x8xf32>
    %48 = arith.addf %45, %47 : vector<8x8xf32>
    %cst_19 = arith.constant dense<0xFF800000> : vector<8xf32>
    %49 = vector.multi_reduction <maximumf>, %48, %cst_19 [1] : vector<8x8xf32> to vector<8xf32>
    %50 = vector.shape_cast %49 : vector<8xf32> to vector<8x1xf32>
    %51 = vector.broadcast %50 : vector<8x1xf32> to vector<8x8xf32>
    %52 = arith.subf %48, %51 : vector<8x8xf32>
    %53 = math.exp %52 : vector<8x8xf32>
    %cst_20 = arith.constant dense<0.000000e+00> : vector<8xf32>
    %54 = vector.multi_reduction <add>, %53, %cst_20 [1] : vector<8x8xf32> to vector<8xf32>
    %55 = vector.shape_cast %54 : vector<8xf32> to vector<8x1xf32>
    %56 = vector.broadcast %55 : vector<8x1xf32> to vector<8x8xf32>
    %57 = arith.divf %53, %56 : vector<8x8xf32>
    %58 = arith.truncf %57 : vector<8x8xf32> to vector<8x8xbf16>
    %59 = arith.truncf %44 : vector<8x8xf32> to vector<8x8xbf16>
    %cst_21 = arith.constant dense<0.000000e+00> : vector<8x8xf32>
    %60 = tpu.matmul %58, %59, %cst_21 {dimension_numbers = #tpu.dot_dimension_numbers<[1], [0], [0], [1], [0, 0, 1, 1], [], []>} : vector<8x8xbf16>, vector<8x8xbf16>, vector<8x8xf32> -> vector<8x8xf32>
    %61 = vector.extract_strided_slice %22 {offsets = [0, 16], sizes = [8, 8], strides = [1, 1]} : vector<8x96xf32> to vector<8x8xf32>
    %62 = vector.extract_strided_slice %22 {offsets = [0, 48], sizes = [8, 8], strides = [1, 1]} : vector<8x96xf32> to vector<8x8xf32>
    %63 = vector.extract_strided_slice %22 {offsets = [0, 80], sizes = [8, 8], strides = [1, 1]} : vector<8x96xf32> to vector<8x8xf32>
    %cst_22 = arith.constant dense<0.000000e+00> : vector<8x8xf32>
    %64 = tpu.matmul %61, %62, %cst_22 {dimension_numbers = #tpu.dot_dimension_numbers<[1], [1], [0], [0], [0, 0, 1, 0], [], []>} : vector<8x8xf32>, vector<8x8xf32>, vector<8x8xf32> -> vector<8x8xf32>
    %65 = vector.extract_strided_slice %8 {offsets = [2, 0, 0], sizes = [1, 8, 8], strides = [1, 1, 1]} : vector<4x8x8xf32> to vector<1x8x8xf32>
    %66 = vector.shape_cast %65 : vector<1x8x8xf32> to vector<8x8xf32>
    %67 = arith.addf %64, %66 : vector<8x8xf32>
    %cst_23 = arith.constant dense<0xFF800000> : vector<8xf32>
    %68 = vector.multi_reduction <maximumf>, %67, %cst_23 [1] : vector<8x8xf32> to vector<8xf32>
    %69 = vector.shape_cast %68 : vector<8xf32> to vector<8x1xf32>
    %70 = vector.broadcast %69 : vector<8x1xf32> to vector<8x8xf32>
    %71 = arith.subf %67, %70 : vector<8x8xf32>
    %72 = math.exp %71 : vector<8x8xf32>
    %cst_24 = arith.constant dense<0.000000e+00> : vector<8xf32>
    %73 = vector.multi_reduction <add>, %72, %cst_24 [1] : vector<8x8xf32> to vector<8xf32>
    %74 = vector.shape_cast %73 : vector<8xf32> to vector<8x1xf32>
    %75 = vector.broadcast %74 : vector<8x1xf32> to vector<8x8xf32>
    %76 = arith.divf %72, %75 : vector<8x8xf32>
    %77 = arith.truncf %76 : vector<8x8xf32> to vector<8x8xbf16>
    %78 = arith.truncf %63 : vector<8x8xf32> to vector<8x8xbf16>
    %cst_25 = arith.constant dense<0.000000e+00> : vector<8x8xf32>
    %79 = tpu.matmul %77, %78, %cst_25 {dimension_numbers = #tpu.dot_dimension_numbers<[1], [0], [0], [1], [0, 0, 1, 1], [], []>} : vector<8x8xbf16>, vector<8x8xbf16>, vector<8x8xf32> -> vector<8x8xf32>
    %80 = vector.extract_strided_slice %22 {offsets = [0, 24], sizes = [8, 8], strides = [1, 1]} : vector<8x96xf32> to vector<8x8xf32>
    %81 = vector.extract_strided_slice %22 {offsets = [0, 56], sizes = [8, 8], strides = [1, 1]} : vector<8x96xf32> to vector<8x8xf32>
    %82 = vector.extract_strided_slice %22 {offsets = [0, 88], sizes = [8, 8], strides = [1, 1]} : vector<8x96xf32> to vector<8x8xf32>
    %cst_26 = arith.constant dense<0.000000e+00> : vector<8x8xf32>
    %83 = tpu.matmul %80, %81, %cst_26 {dimension_numbers = #tpu.dot_dimension_numbers<[1], [1], [0], [0], [0, 0, 1, 0], [], []>} : vector<8x8xf32>, vector<8x8xf32>, vector<8x8xf32> -> vector<8x8xf32>
    %84 = vector.extract_strided_slice %8 {offsets = [3, 0, 0], sizes = [1, 8, 8], strides = [1, 1, 1]} : vector<4x8x8xf32> to vector<1x8x8xf32>
    %85 = vector.shape_cast %84 : vector<1x8x8xf32> to vector<8x8xf32>
    %86 = arith.addf %83, %85 : vector<8x8xf32>
    %cst_27 = arith.constant dense<0xFF800000> : vector<8xf32>
    %87 = vector.multi_reduction <maximumf>, %86, %cst_27 [1] : vector<8x8xf32> to vector<8xf32>
    %88 = vector.shape_cast %87 : vector<8xf32> to vector<8x1xf32>
    %89 = vector.broadcast %88 : vector<8x1xf32> to vector<8x8xf32>
    %90 = arith.subf %86, %89 : vector<8x8xf32>
    %91 = math.exp %90 : vector<8x8xf32>
    %cst_28 = arith.constant dense<0.000000e+00> : vector<8xf32>
    %92 = vector.multi_reduction <add>, %91, %cst_28 [1] : vector<8x8xf32> to vector<8xf32>
    %93 = vector.shape_cast %92 : vector<8xf32> to vector<8x1xf32>
    %94 = vector.broadcast %93 : vector<8x1xf32> to vector<8x8xf32>
    %95 = arith.divf %91, %94 : vector<8x8xf32>
    %96 = arith.truncf %95 : vector<8x8xf32> to vector<8x8xbf16>
    %97 = arith.truncf %82 : vector<8x8xf32> to vector<8x8xbf16>
    %cst_29 = arith.constant dense<0.000000e+00> : vector<8x8xf32>
    %98 = tpu.matmul %96, %97, %cst_29 {dimension_numbers = #tpu.dot_dimension_numbers<[1], [0], [0], [1], [0, 0, 1, 1], [], []>} : vector<8x8xbf16>, vector<8x8xbf16>, vector<8x8xf32> -> vector<8x8xf32>
    %99 = tpu.concatenate %41, %60, %79, %98 in 1 : vector<8x8xf32>, vector<8x8xf32>, vector<8x8xf32>, vector<8x8xf32> -> vector<8x32xf32>
    %100 = arith.truncf %99 : vector<8x32xf32> to vector<8x32xbf16>
    %c0_30 = arith.constant 0 : index
    %c0_31 = arith.constant 0 : index
    %c0_32 = arith.constant 0 : index
    %101 = vector.load %arg5[%c0_30, %c0_31, %c0_32] : memref<2x32x32xbf16, #tpu.memory_space<vmem>>, vector<1x32x32xbf16>
    %102 = vector.shape_cast %101 : vector<1x32x32xbf16> to vector<32x32xbf16>
    %cst_33 = arith.constant dense<0.000000e+00> : vector<8x32xf32>
    %103 = tpu.matmul %100, %102, %cst_33 {dimension_numbers = #tpu.dot_dimension_numbers<[1], [0], [0], [1], [0, 0, 1, 1], [], []>} : vector<8x32xbf16>, vector<32x32xbf16>, vector<8x32xf32> -> vector<8x32xf32>
    %104 = arith.addf %1, %103 : vector<8x32xf32>
    %105 = arith.mulf %104, %104 : vector<8x32xf32>
    %cst_34 = arith.constant dense<0.000000e+00> : vector<8xf32>
    %106 = vector.multi_reduction <add>, %105, %cst_34 [1] : vector<8x32xf32> to vector<8xf32>
    %107 = vector.shape_cast %106 : vector<8xf32> to vector<8x1xf32>
    %cst_35 = arith.constant 3.200000e+01 : f32
    %108 = vector.broadcast %cst_35 : f32 to vector<8x1xf32>
    %109 = arith.divf %107, %108 : vector<8x1xf32>
    %cst_36 = arith.constant 9.99999997E-7 : f32
    %110 = vector.broadcast %cst_36 : f32 to vector<8x1xf32>
    %111 = arith.addf %109, %110 : vector<8x1xf32>
    %112 = math.rsqrt %111 : vector<8x1xf32>
    %113 = vector.broadcast %112 : vector<8x1xf32> to vector<8x32xf32>
    %114 = arith.mulf %104, %113 : vector<8x32xf32>
    %115 = arith.truncf %114 : vector<8x32xf32> to vector<8x32xbf16>
    %c0_37 = arith.constant 0 : index
    %c0_38 = arith.constant 0 : index
    %c0_39 = arith.constant 0 : index
    %116 = vector.load %arg6[%c0_37, %c0_38, %c0_39] : memref<2x32x64xbf16, #tpu.memory_space<vmem>>, vector<1x32x64xbf16>
    %117 = vector.shape_cast %116 : vector<1x32x64xbf16> to vector<32x64xbf16>
    %cst_40 = arith.constant dense<0.000000e+00> : vector<8x64xf32>
    %118 = tpu.matmul %115, %117, %cst_40 {dimension_numbers = #tpu.dot_dimension_numbers<[1], [0], [0], [1], [0, 0, 1, 1], [], []>} : vector<8x32xbf16>, vector<32x64xbf16>, vector<8x64xf32> -> vector<8x64xf32>
    %cst_41 = arith.constant 0.000000e+00 : f32
    %119 = vector.broadcast %cst_41 : f32 to vector<8x64xf32>
    %120 = arith.maximumf %118, %119 : vector<8x64xf32>
    %121 = arith.truncf %120 : vector<8x64xf32> to vector<8x64xbf16>
    %c0_42 = arith.constant 0 : index
    %c0_43 = arith.constant 0 : index
    %c0_44 = arith.constant 0 : index
    %122 = vector.load %arg7[%c0_42, %c0_43, %c0_44] : memref<2x64x32xbf16, #tpu.memory_space<vmem>>, vector<1x64x32xbf16>
    %123 = vector.shape_cast %122 : vector<1x64x32xbf16> to vector<64x32xbf16>
    %cst_45 = arith.constant dense<0.000000e+00> : vector<8x32xf32>
    %124 = tpu.matmul %121, %123, %cst_45 {dimension_numbers = #tpu.dot_dimension_numbers<[1], [0], [0], [1], [0, 0, 1, 1], [], []>} : vector<8x64xbf16>, vector<64x32xbf16>, vector<8x32xf32> -> vector<8x32xf32>
    %125 = arith.addf %104, %124 : vector<8x32xf32>
    %126 = arith.mulf %125, %125 : vector<8x32xf32>
    %cst_46 = arith.constant dense<0.000000e+00> : vector<8xf32>
    %127 = vector.multi_reduction <add>, %126, %cst_46 [1] : vector<8x32xf32> to vector<8xf32>
    %128 = vector.shape_cast %127 : vector<8xf32> to vector<8x1xf32>
    %cst_47 = arith.constant 3.200000e+01 : f32
    %129 = vector.broadcast %cst_47 : f32 to vector<8x1xf32>
    %130 = arith.divf %128, %129 : vector<8x1xf32>
    %cst_48 = arith.constant 9.99999997E-7 : f32
    %131 = vector.broadcast %cst_48 : f32 to vector<8x1xf32>
    %132 = arith.addf %130, %131 : vector<8x1xf32>
    %133 = math.rsqrt %132 : vector<8x1xf32>
    %134 = vector.broadcast %133 : vector<8x1xf32> to vector<8x32xf32>
    %135 = arith.mulf %125, %134 : vector<8x32xf32>
    %136 = arith.truncf %135 : vector<8x32xf32> to vector<8x32xbf16>
    %c1 = arith.constant 1 : index
    %c0_49 = arith.constant 0 : index
    %c0_50 = arith.constant 0 : index
    %137 = vector.load %arg4[%c1, %c0_49, %c0_50] : memref<2x32x96xbf16, #tpu.memory_space<vmem>>, vector<1x32x96xbf16>
    %138 = vector.shape_cast %137 : vector<1x32x96xbf16> to vector<32x96xbf16>
    %cst_51 = arith.constant dense<0.000000e+00> : vector<8x96xf32>
    %139 = tpu.matmul %136, %138, %cst_51 {dimension_numbers = #tpu.dot_dimension_numbers<[1], [0], [0], [1], [0, 0, 1, 1], [], []>} : vector<8x32xbf16>, vector<32x96xbf16>, vector<8x96xf32> -> vector<8x96xf32>
    %140 = vector.extract_strided_slice %139 {offsets = [0, 0], sizes = [8, 8], strides = [1, 1]} : vector<8x96xf32> to vector<8x8xf32>
    %141 = vector.extract_strided_slice %139 {offsets = [0, 32], sizes = [8, 8], strides = [1, 1]} : vector<8x96xf32> to vector<8x8xf32>
    %142 = vector.extract_strided_slice %139 {offsets = [0, 64], sizes = [8, 8], strides = [1, 1]} : vector<8x96xf32> to vector<8x8xf32>
    %cst_52 = arith.constant dense<0.000000e+00> : vector<8x8xf32>
    %143 = tpu.matmul %140, %141, %cst_52 {dimension_numbers = #tpu.dot_dimension_numbers<[1], [1], [0], [0], [0, 0, 1, 0], [], []>} : vector<8x8xf32>, vector<8x8xf32>, vector<8x8xf32> -> vector<8x8xf32>
    %144 = vector.extract_strided_slice %8 {offsets = [0, 0, 0], sizes = [1, 8, 8], strides = [1, 1, 1]} : vector<4x8x8xf32> to vector<1x8x8xf32>
    %145 = vector.shape_cast %144 : vector<1x8x8xf32> to vector<8x8xf32>
    %146 = arith.addf %143, %145 : vector<8x8xf32>
    %cst_53 = arith.constant dense<0xFF800000> : vector<8xf32>
    %147 = vector.multi_reduction <maximumf>, %146, %cst_53 [1] : vector<8x8xf32> to vector<8xf32>
    %148 = vector.shape_cast %147 : vector<8xf32> to vector<8x1xf32>
    %149 = vector.broadcast %148 : vector<8x1xf32> to vector<8x8xf32>
    %150 = arith.subf %146, %149 : vector<8x8xf32>
    %151 = math.exp %150 : vector<8x8xf32>
    %cst_54 = arith.constant dense<0.000000e+00> : vector<8xf32>
    %152 = vector.multi_reduction <add>, %151, %cst_54 [1] : vector<8x8xf32> to vector<8xf32>
    %153 = vector.shape_cast %152 : vector<8xf32> to vector<8x1xf32>
    %154 = vector.broadcast %153 : vector<8x1xf32> to vector<8x8xf32>
    %155 = arith.divf %151, %154 : vector<8x8xf32>
    %156 = arith.truncf %155 : vector<8x8xf32> to vector<8x8xbf16>
    %157 = arith.truncf %142 : vector<8x8xf32> to vector<8x8xbf16>
    %cst_55 = arith.constant dense<0.000000e+00> : vector<8x8xf32>
    %158 = tpu.matmul %156, %157, %cst_55 {dimension_numbers = #tpu.dot_dimension_numbers<[1], [0], [0], [1], [0, 0, 1, 1], [], []>} : vector<8x8xbf16>, vector<8x8xbf16>, vector<8x8xf32> -> vector<8x8xf32>
    %159 = vector.extract_strided_slice %139 {offsets = [0, 8], sizes = [8, 8], strides = [1, 1]} : vector<8x96xf32> to vector<8x8xf32>
    %160 = vector.extract_strided_slice %139 {offsets = [0, 40], sizes = [8, 8], strides = [1, 1]} : vector<8x96xf32> to vector<8x8xf32>
    %161 = vector.extract_strided_slice %139 {offsets = [0, 72], sizes = [8, 8], strides = [1, 1]} : vector<8x96xf32> to vector<8x8xf32>
    %cst_56 = arith.constant dense<0.000000e+00> : vector<8x8xf32>
    %162 = tpu.matmul %159, %160, %cst_56 {dimension_numbers = #tpu.dot_dimension_numbers<[1], [1], [0], [0], [0, 0, 1, 0], [], []>} : vector<8x8xf32>, vector<8x8xf32>, vector<8x8xf32> -> vector<8x8xf32>
    %163 = vector.extract_strided_slice %8 {offsets = [1, 0, 0], sizes = [1, 8, 8], strides = [1, 1, 1]} : vector<4x8x8xf32> to vector<1x8x8xf32>
    %164 = vector.shape_cast %163 : vector<1x8x8xf32> to vector<8x8xf32>
    %165 = arith.addf %162, %164 : vector<8x8xf32>
    %cst_57 = arith.constant dense<0xFF800000> : vector<8xf32>
    %166 = vector.multi_reduction <maximumf>, %165, %cst_57 [1] : vector<8x8xf32> to vector<8xf32>
    %167 = vector.shape_cast %166 : vector<8xf32> to vector<8x1xf32>
    %168 = vector.broadcast %167 : vector<8x1xf32> to vector<8x8xf32>
    %169 = arith.subf %165, %168 : vector<8x8xf32>
    %170 = math.exp %169 : vector<8x8xf32>
    %cst_58 = arith.constant dense<0.000000e+00> : vector<8xf32>
    %171 = vector.multi_reduction <add>, %170, %cst_58 [1] : vector<8x8xf32> to vector<8xf32>
    %172 = vector.shape_cast %171 : vector<8xf32> to vector<8x1xf32>
    %173 = vector.broadcast %172 : vector<8x1xf32> to vector<8x8xf32>
    %174 = arith.divf %170, %173 : vector<8x8xf32>
    %175 = arith.truncf %174 : vector<8x8xf32> to vector<8x8xbf16>
    %176 = arith.truncf %161 : vector<8x8xf32> to vector<8x8xbf16>
    %cst_59 = arith.constant dense<0.000000e+00> : vector<8x8xf32>
    %177 = tpu.matmul %175, %176, %cst_59 {dimension_numbers = #tpu.dot_dimension_numbers<[1], [0], [0], [1], [0, 0, 1, 1], [], []>} : vector<8x8xbf16>, vector<8x8xbf16>, vector<8x8xf32> -> vector<8x8xf32>
    %178 = vector.extract_strided_slice %139 {offsets = [0, 16], sizes = [8, 8], strides = [1, 1]} : vector<8x96xf32> to vector<8x8xf32>
    %179 = vector.extract_strided_slice %139 {offsets = [0, 48], sizes = [8, 8], strides = [1, 1]} : vector<8x96xf32> to vector<8x8xf32>
    %180 = vector.extract_strided_slice %139 {offsets = [0, 80], sizes = [8, 8], strides = [1, 1]} : vector<8x96xf32> to vector<8x8xf32>
    %cst_60 = arith.constant dense<0.000000e+00> : vector<8x8xf32>
    %181 = tpu.matmul %178, %179, %cst_60 {dimension_numbers = #tpu.dot_dimension_numbers<[1], [1], [0], [0], [0, 0, 1, 0], [], []>} : vector<8x8xf32>, vector<8x8xf32>, vector<8x8xf32> -> vector<8x8xf32>
    %182 = vector.extract_strided_slice %8 {offsets = [2, 0, 0], sizes = [1, 8, 8], strides = [1, 1, 1]} : vector<4x8x8xf32> to vector<1x8x8xf32>
    %183 = vector.shape_cast %182 : vector<1x8x8xf32> to vector<8x8xf32>
    %184 = arith.addf %181, %183 : vector<8x8xf32>
    %cst_61 = arith.constant dense<0xFF800000> : vector<8xf32>
    %185 = vector.multi_reduction <maximumf>, %184, %cst_61 [1] : vector<8x8xf32> to vector<8xf32>
    %186 = vector.shape_cast %185 : vector<8xf32> to vector<8x1xf32>
    %187 = vector.broadcast %186 : vector<8x1xf32> to vector<8x8xf32>
    %188 = arith.subf %184, %187 : vector<8x8xf32>
    %189 = math.exp %188 : vector<8x8xf32>
    %cst_62 = arith.constant dense<0.000000e+00> : vector<8xf32>
    %190 = vector.multi_reduction <add>, %189, %cst_62 [1] : vector<8x8xf32> to vector<8xf32>
    %191 = vector.shape_cast %190 : vector<8xf32> to vector<8x1xf32>
    %192 = vector.broadcast %191 : vector<8x1xf32> to vector<8x8xf32>
    %193 = arith.divf %189, %192 : vector<8x8xf32>
    %194 = arith.truncf %193 : vector<8x8xf32> to vector<8x8xbf16>
    %195 = arith.truncf %180 : vector<8x8xf32> to vector<8x8xbf16>
    %cst_63 = arith.constant dense<0.000000e+00> : vector<8x8xf32>
    %196 = tpu.matmul %194, %195, %cst_63 {dimension_numbers = #tpu.dot_dimension_numbers<[1], [0], [0], [1], [0, 0, 1, 1], [], []>} : vector<8x8xbf16>, vector<8x8xbf16>, vector<8x8xf32> -> vector<8x8xf32>
    %197 = vector.extract_strided_slice %139 {offsets = [0, 24], sizes = [8, 8], strides = [1, 1]} : vector<8x96xf32> to vector<8x8xf32>
    %198 = vector.extract_strided_slice %139 {offsets = [0, 56], sizes = [8, 8], strides = [1, 1]} : vector<8x96xf32> to vector<8x8xf32>
    %199 = vector.extract_strided_slice %139 {offsets = [0, 88], sizes = [8, 8], strides = [1, 1]} : vector<8x96xf32> to vector<8x8xf32>
    %cst_64 = arith.constant dense<0.000000e+00> : vector<8x8xf32>
    %200 = tpu.matmul %197, %198, %cst_64 {dimension_numbers = #tpu.dot_dimension_numbers<[1], [1], [0], [0], [0, 0, 1, 0], [], []>} : vector<8x8xf32>, vector<8x8xf32>, vector<8x8xf32> -> vector<8x8xf32>
    %201 = vector.extract_strided_slice %8 {offsets = [3, 0, 0], sizes = [1, 8, 8], strides = [1, 1, 1]} : vector<4x8x8xf32> to vector<1x8x8xf32>
    %202 = vector.shape_cast %201 : vector<1x8x8xf32> to vector<8x8xf32>
    %203 = arith.addf %200, %202 : vector<8x8xf32>
    %cst_65 = arith.constant dense<0xFF800000> : vector<8xf32>
    %204 = vector.multi_reduction <maximumf>, %203, %cst_65 [1] : vector<8x8xf32> to vector<8xf32>
    %205 = vector.shape_cast %204 : vector<8xf32> to vector<8x1xf32>
    %206 = vector.broadcast %205 : vector<8x1xf32> to vector<8x8xf32>
    %207 = arith.subf %203, %206 : vector<8x8xf32>
    %208 = math.exp %207 : vector<8x8xf32>
    %cst_66 = arith.constant dense<0.000000e+00> : vector<8xf32>
    %209 = vector.multi_reduction <add>, %208, %cst_66 [1] : vector<8x8xf32> to vector<8xf32>
    %210 = vector.shape_cast %209 : vector<8xf32> to vector<8x1xf32>
    %211 = vector.broadcast %210 : vector<8x1xf32> to vector<8x8xf32>
    %212 = arith.divf %208, %211 : vector<8x8xf32>
    %213 = arith.truncf %212 : vector<8x8xf32> to vector<8x8xbf16>
    %214 = arith.truncf %199 : vector<8x8xf32> to vector<8x8xbf16>
    %cst_67 = arith.constant dense<0.000000e+00> : vector<8x8xf32>
    %215 = tpu.matmul %213, %214, %cst_67 {dimension_numbers = #tpu.dot_dimension_numbers<[1], [0], [0], [1], [0, 0, 1, 1], [], []>} : vector<8x8xbf16>, vector<8x8xbf16>, vector<8x8xf32> -> vector<8x8xf32>
    %216 = tpu.concatenate %158, %177, %196, %215 in 1 : vector<8x8xf32>, vector<8x8xf32>, vector<8x8xf32>, vector<8x8xf32> -> vector<8x32xf32>
    %217 = arith.truncf %216 : vector<8x32xf32> to vector<8x32xbf16>
    %c1_68 = arith.constant 1 : index
    %c0_69 = arith.constant 0 : index
    %c0_70 = arith.constant 0 : index
    %218 = vector.load %arg5[%c1_68, %c0_69, %c0_70] : memref<2x32x32xbf16, #tpu.memory_space<vmem>>, vector<1x32x32xbf16>
    %219 = vector.shape_cast %218 : vector<1x32x32xbf16> to vector<32x32xbf16>
    %cst_71 = arith.constant dense<0.000000e+00> : vector<8x32xf32>
    %220 = tpu.matmul %217, %219, %cst_71 {dimension_numbers = #tpu.dot_dimension_numbers<[1], [0], [0], [1], [0, 0, 1, 1], [], []>} : vector<8x32xbf16>, vector<32x32xbf16>, vector<8x32xf32> -> vector<8x32xf32>
    %221 = arith.addf %125, %220 : vector<8x32xf32>
    %222 = arith.mulf %221, %221 : vector<8x32xf32>
    %cst_72 = arith.constant dense<0.000000e+00> : vector<8xf32>
    %223 = vector.multi_reduction <add>, %222, %cst_72 [1] : vector<8x32xf32> to vector<8xf32>
    %224 = vector.shape_cast %223 : vector<8xf32> to vector<8x1xf32>
    %cst_73 = arith.constant 3.200000e+01 : f32
    %225 = vector.broadcast %cst_73 : f32 to vector<8x1xf32>
    %226 = arith.divf %224, %225 : vector<8x1xf32>
    %cst_74 = arith.constant 9.99999997E-7 : f32
    %227 = vector.broadcast %cst_74 : f32 to vector<8x1xf32>
    %228 = arith.addf %226, %227 : vector<8x1xf32>
    %229 = math.rsqrt %228 : vector<8x1xf32>
    %230 = vector.broadcast %229 : vector<8x1xf32> to vector<8x32xf32>
    %231 = arith.mulf %221, %230 : vector<8x32xf32>
    %232 = arith.truncf %231 : vector<8x32xf32> to vector<8x32xbf16>
    %c1_75 = arith.constant 1 : index
    %c0_76 = arith.constant 0 : index
    %c0_77 = arith.constant 0 : index
    %233 = vector.load %arg6[%c1_75, %c0_76, %c0_77] : memref<2x32x64xbf16, #tpu.memory_space<vmem>>, vector<1x32x64xbf16>
    %234 = vector.shape_cast %233 : vector<1x32x64xbf16> to vector<32x64xbf16>
    %cst_78 = arith.constant dense<0.000000e+00> : vector<8x64xf32>
    %235 = tpu.matmul %232, %234, %cst_78 {dimension_numbers = #tpu.dot_dimension_numbers<[1], [0], [0], [1], [0, 0, 1, 1], [], []>} : vector<8x32xbf16>, vector<32x64xbf16>, vector<8x64xf32> -> vector<8x64xf32>
    %cst_79 = arith.constant 0.000000e+00 : f32
    %236 = vector.broadcast %cst_79 : f32 to vector<8x64xf32>
    %237 = arith.maximumf %235, %236 : vector<8x64xf32>
    %238 = arith.truncf %237 : vector<8x64xf32> to vector<8x64xbf16>
    %c1_80 = arith.constant 1 : index
    %c0_81 = arith.constant 0 : index
    %c0_82 = arith.constant 0 : index
    %239 = vector.load %arg7[%c1_80, %c0_81, %c0_82] : memref<2x64x32xbf16, #tpu.memory_space<vmem>>, vector<1x64x32xbf16>
    %240 = vector.shape_cast %239 : vector<1x64x32xbf16> to vector<64x32xbf16>
    %cst_83 = arith.constant dense<0.000000e+00> : vector<8x32xf32>
    %241 = tpu.matmul %238, %240, %cst_83 {dimension_numbers = #tpu.dot_dimension_numbers<[1], [0], [0], [1], [0, 0, 1, 1], [], []>} : vector<8x64xbf16>, vector<64x32xbf16>, vector<8x32xf32> -> vector<8x32xf32>
    %242 = arith.addf %221, %241 : vector<8x32xf32>
    %243 = arith.mulf %242, %242 : vector<8x32xf32>
    %cst_84 = arith.constant dense<0.000000e+00> : vector<8xf32>
    %244 = vector.multi_reduction <add>, %243, %cst_84 [1] : vector<8x32xf32> to vector<8xf32>
    %245 = vector.shape_cast %244 : vector<8xf32> to vector<8x1xf32>
    %cst_85 = arith.constant 3.200000e+01 : f32
    %246 = vector.broadcast %cst_85 : f32 to vector<8x1xf32>
    %247 = arith.divf %245, %246 : vector<8x1xf32>
    %cst_86 = arith.constant 9.99999997E-7 : f32
    %248 = vector.broadcast %cst_86 : f32 to vector<8x1xf32>
    %249 = arith.addf %247, %248 : vector<8x1xf32>
    %250 = math.rsqrt %249 : vector<8x1xf32>
    %251 = vector.broadcast %250 : vector<8x1xf32> to vector<8x32xf32>
    %252 = arith.mulf %242, %251 : vector<8x32xf32>
    %c0_87 = arith.constant 0 : index
    %c0_88 = arith.constant 0 : index
    %253 = vector.load %arg8[%c0_87, %c0_88] : memref<1x32xf32, #tpu.memory_space<vmem>>, vector<1x32xf32>
    %254 = vector.broadcast %253 : vector<1x32xf32> to vector<8x32xf32>
    %255 = arith.mulf %252, %254 : vector<8x32xf32>
    %c0_89 = arith.constant 0 : index
    %c0_90 = arith.constant 0 : index
    %c0_91 = arith.constant 0 : index
    %256 = vector.load %arg9[%c0_89, %c0_90, %c0_91] : memref<1x8x32xf32, #tpu.memory_space<vmem>>, vector<1x8x32xf32>
    %257 = vector.shape_cast %256 : vector<1x8x32xf32> to vector<8x32xf32>
    %258 = vector.shape_cast %255 : vector<8x32xf32> to vector<1x8x32xf32>
    tpu.vector_store %arg9[%c0_89, %c0_90, %c0_91], %258 {strides = array<i32>} : memref<1x8x32xf32, #tpu.memory_space<vmem>>, vector<1x8x32xf32>,
    return
  }
  func.func @transform_0(%arg0: i32) -> (i32, i32, i32) {
    %c0_i32 = arith.constant 0 : i32
    %c0_i32_0 = arith.constant 0 : i32
    %c0_i32_1 = arith.constant 0 : i32
    return %arg0, %c0_i32, %c0_i32_0 : i32, i32, i32
  }
  func.func @transform_1(%arg0: i32) -> (i32, i32, i32) {
    %c0_i32 = arith.constant 0 : i32
    %c0_i32_0 = arith.constant 0 : i32
    %c0_i32_1 = arith.constant 0 : i32
    return %arg0, %c0_i32, %c0_i32_0 : i32, i32, i32
  }
  func.func @transform_2(%arg0: i32) -> (i32, i32, i32) {
    %c0_i32 = arith.constant 0 : i32
    %c0_i32_0 = arith.constant 0 : i32
    %c0_i32_1 = arith.constant 0 : i32
    %c0_i32_2 = arith.constant 0 : i32
    return %c0_i32, %c0_i32_0, %c0_i32_1 : i32, i32, i32
  }
  func.func @transform_3(%arg0: i32) -> (i32, i32, i32) {
    %c0_i32 = arith.constant 0 : i32
    %c0_i32_0 = arith.constant 0 : i32
    %c0_i32_1 = arith.constant 0 : i32
    %c0_i32_2 = arith.constant 0 : i32
    return %c0_i32, %c0_i32_0, %c0_i32_1 : i32, i32, i32
  }
  func.func @transform_4(%arg0: i32) -> (i32, i32, i32) {
    %c0_i32 = arith.constant 0 : i32
    %c0_i32_0 = arith.constant 0 : i32
    %c0_i32_1 = arith.constant 0 : i32
    %c0_i32_2 = arith.constant 0 : i32
    return %c0_i32, %c0_i32_0, %c0_i32_1 : i32, i32, i32
  }
  func.func @transform_5(%arg0: i32) -> (i32, i32, i32) {
    %c0_i32 = arith.constant 0 : i32
    %c0_i32_0 = arith.constant 0 : i32
    %c0_i32_1 = arith.constant 0 : i32
    %c0_i32_2 = arith.constant 0 : i32
    return %c0_i32, %c0_i32_0, %c0_i32_1 : i32, i32, i32
  }
  func.func @transform_6(%arg0: i32) -> (i32, i32, i32) {
    %c0_i32 = arith.constant 0 : i32
    %c0_i32_0 = arith.constant 0 : i32
    %c0_i32_1 = arith.constant 0 : i32
    %c0_i32_2 = arith.constant 0 : i32
    return %c0_i32, %c0_i32_0, %c0_i32_1 : i32, i32, i32
  }
  func.func @transform_7(%arg0: i32) -> (i32, i32) {
    %c0_i32 = arith.constant 0 : i32
    %c0_i32_0 = arith.constant 0 : i32
    %c0_i32_1 = arith.constant 0 : i32
    return %c0_i32, %c0_i32_0 : i32, i32
  }
  func.func @transform_8(%arg0: i32) -> (i32, i32, i32) {
    %c0_i32 = arith.constant 0 : i32
    %c0_i32_0 = arith.constant 0 : i32
    %c0_i32_1 = arith.constant 0 : i32
    return %arg0, %c0_i32, %c0_i32_0 : i32, i32, i32
  }
}

</mosaic_0001>

<llo_original>
// kernel: t5_encoder_forward.1
$region0: #{t5_encoder_forward.1}
  #allocation0 [shape = 'u32[]', space=smem, size = 0x4, offset = 0x4, fixed_abs, tag = 'smem constant byte address 0x4 - core index']
  #allocation1 [shape = 'u32[72,128]{1,0:T(1,128)}', space=vmem, size = 0x9000, scoped, tag = 'internal scratch']
  %s0 = inlined_call_operand.vmem [shape: f32[2,8,32], index: 0, kind: input, shape index: {}]
  %s1 = inlined_call_operand.vmem [shape: f32[2,1,8], index: 1, kind: input, shape index: {}]
  %s2 = inlined_call_operand.vmem [shape: bf16[4,8,8], index: 2, kind: input, shape index: {}]
  %s3 = inlined_call_operand.vmem [shape: bf16[2,32,96], index: 3, kind: input, shape index: {}]
  %s4 = inlined_call_operand.vmem [shape: bf16[2,32,32], index: 4, kind: input, shape index: {}]
  %s5 = inlined_call_operand.vmem [shape: bf16[2,32,64], index: 5, kind: input, shape index: {}]
  %s6 = inlined_call_operand.vmem [shape: bf16[2,64,32], index: 6, kind: input, shape index: {}]
  %s7 = inlined_call_operand.vmem [shape: f32[1,32], index: 7, kind: input, shape index: {}]
  %s8 = inlined_call_operand.hbm [shape: f32[2,8,32], index: 8, kind: output, shape index: {}]
  %s9 = sld [smem:[#allocation0]]
  $region65: #{t5_encoder_forward.1} parent=0
    _
  %s11 = ssub.s32 1, %s9
  %s12 = scalar_select 0, %s11, %s9
  $region1: #{t5_encoder_forward.1} parent=0
    #allocation2 [shape = 'u8[8192]{0}', space=vmem, size = 0x2000, scoped, tag = 'output window, operand 0']
    #allocation3 [shape = 's32[2]{0}', space=sflag, size = 0x8, scoped, tag = 'scoped memory for t5_encoder_forward.1']
    %13 = vsyncpa [#allocation3], 0
    %s14 = scalar_lea.sflag [#allocation3], 1
    %15 = vsyncpa %s14, 0
    loop: start=0, step=1, limit=4
    $region2: #{t5_encoder_forward.1} parent=1 // loop_pre_header
      _
    $region3: #{t5_encoder_forward.1} parent=1 // loop_header
      %s17 = sphi 0, %s21
      %p18 = scmp.ge.s32.totalorder %s17, 4
      %s27 = sphi 0, %s29
      %s30 = sphi 0, %s27
      %s31 = sphi 0, %s30
      %s47 = sphi 0, %s31
      %s53 = sphi 0, %s55
      %s56 = sphi 0, %s53
      %s57 = sphi 0, %s56
      %s73 = sphi 0, %s57
      %s77 = sphi 0, %s77
      %s79 = sphi 0, %s77
      %s80 = sphi 0, %s79
      %s94 = sphi 0, %s80
      %s98 = sphi 0, %s98
      %s100 = sphi 0, %s98
      %s101 = sphi 0, %s100
      %s115 = sphi 0, %s101
      %s119 = sphi 0, %s119
      %s121 = sphi 0, %s119
      %s122 = sphi 0, %s121
      %s136 = sphi 0, %s122
      %s140 = sphi 0, %s140
      %s142 = sphi 0, %s140
      %s143 = sphi 0, %s142
      %s157 = sphi 0, %s143
      %s161 = sphi 0, %s161
      %s163 = sphi 0, %s161
      %s164 = sphi 0, %s163
      %s178 = sphi 0, %s164
      %s182 = sphi 0, %s182
      %s184 = sphi 0, %s182
      %s185 = sphi 0, %s184
      %s199 = sphi 0, %s185
      %s205 = sphi 0, %s207
      %s208 = sphi 0, %s205
      %s209 = sphi 0, %s208
      %s225 = sphi 0, %s209
    $region4: #{t5_encoder_forward.1} parent=1 // loop_header_branch
      %20 = sbr.rel (%p18) target = $region8
    $region5: #{t5_encoder_forward.1} parent=1 // loop_body
      %s22 = ssub.s32 %s17, 1
      %s23 = ssub.s32 %s17, 2
      %s24 = sadd.s32 %s17, 1
      %s25 = ssub.s32 %s17, %s24
      %p26 = scmp.eq.s32.totalorder %s25, 0
      %s28 = sadd.s32 %s27, 1
      %s29 = scalar_select %p26, %s27, %s28
      %p32 = pneg %p26
      %p33 = scmp.eq.s32.totalorder %s17, 1
      %p34 = por %p32, %p33
      %p35 = scmp.ne.s32.totalorder %s27, %s30
      %p36 = scmp.eq.s32.totalorder %s17, 0
      %p37 = por %p35, %p36
      %p38 = scmp.ne.s32.totalorder %s27, %s30
      %p39 = scmp.eq.s32.totalorder %s22, 1
      %p40 = por %p38, %p39
      %p41 = scmp.ne.s32.totalorder %s30, %s31
      %p42 = scmp.eq.s32.totalorder %s22, 0
      %p43 = por %p41, %p42
      %p44 = scmp.ne.s32.totalorder %s30, %s31
      %p45 = scmp.eq.s32.totalorder %s23, 1
      %p46 = por %p44, %p45
      %p48 = scmp.ne.s32.totalorder %s31, %s47
      %p49 = scmp.eq.s32.totalorder %s23, 0
      %p50 = por %p48, %p49
      %s51 = ssub.s32 %s17, %s24
      %p52 = scmp.eq.s32.totalorder %s51, 0
      %s54 = sadd.s32 %s53, 1
      %s55 = scalar_select %p52, %s53, %s54
      %p58 = pneg %p52
      %p59 = scmp.eq.s32.totalorder %s17, 1
      %p60 = por %p58, %p59
      %p61 = scmp.ne.s32.totalorder %s53, %s56
      %p62 = scmp.eq.s32.totalorder %s17, 0
      %p63 = por %p61, %p62
      %p64 = scmp.ne.s32.totalorder %s53, %s56
      %p65 = scmp.eq.s32.totalorder %s22, 1
      %p66 = por %p64, %p65
      %p67 = scmp.ne.s32.totalorder %s56, %s57
      %p68 = scmp.eq.s32.totalorder %s22, 0
      %p69 = por %p67, %p68
      %p70 = scmp.ne.s32.totalorder %s56, %s57
      %p71 = scmp.eq.s32.totalorder %s23, 1
      %p72 = por %p70, %p71
      %p74 = scmp.ne.s32.totalorder %s57, %s73
      %p75 = scmp.eq.s32.totalorder %s23, 0
      %p76 = por %p74, %p75
      %s78 = sadd.s32 %s77, 1
      %p81 = scmp.eq.s32.totalorder %s17, 1
      %p82 = scmp.ne.s32.totalorder %s77, %s79
      %p83 = scmp.eq.s32.totalorder %s17, 0
      %p84 = por %p82, %p83
      %p85 = scmp.ne.s32.totalorder %s77, %s79
      %p86 = scmp.eq.s32.totalorder %s22, 1
      %p87 = por %p85, %p86
      %p88 = scmp.ne.s32.totalorder %s79, %s80
      %p89 = scmp.eq.s32.totalorder %s22, 0
      %p90 = por %p88, %p89
      %p91 = scmp.ne.s32.totalorder %s79, %s80
      %p92 = scmp.eq.s32.totalorder %s23, 1
      %p93 = por %p91, %p92
      %p95 = scmp.ne.s32.totalorder %s80, %s94
      %p96 = scmp.eq.s32.totalorder %s23, 0
      %p97 = por %p95, %p96
      %s99 = sadd.s32 %s98, 1
      %p102 = scmp.eq.s32.totalorder %s17, 1
      %p103 = scmp.ne.s32.totalorder %s98, %s100
      %p104 = scmp.eq.s32.totalorder %s17, 0
      %p105 = por %p103, %p104
      %p106 = scmp.ne.s32.totalorder %s98, %s100
      %p107 = scmp.eq.s32.totalorder %s22, 1
      %p108 = por %p106, %p107
      %p109 = scmp.ne.s32.totalorder %s100, %s101
      %p110 = scmp.eq.s32.totalorder %s22, 0
      %p111 = por %p109, %p110
      %p112 = scmp.ne.s32.totalorder %s100, %s101
      %p113 = scmp.eq.s32.totalorder %s23, 1
      %p114 = por %p112, %p113
      %p116 = scmp.ne.s32.totalorder %s101, %s115
      %p117 = scmp.eq.s32.totalorder %s23, 0
      %p118 = por %p116, %p117
      %s120 = sadd.s32 %s119, 1
      %p123 = scmp.eq.s32.totalorder %s17, 1
      %p124 = scmp.ne.s32.totalorder %s119, %s121
      %p125 = scmp.eq.s32.totalorder %s17, 0
      %p126 = por %p124, %p125
      %p127 = scmp.ne.s32.totalorder %s119, %s121
      %p128 = scmp.eq.s32.totalorder %s22, 1
      %p129 = por %p127, %p128
      %p130 = scmp.ne.s32.totalorder %s121, %s122
      %p131 = scmp.eq.s32.totalorder %s22, 0
      %p132 = por %p130, %p131
      %p133 = scmp.ne.s32.totalorder %s121, %s122
      %p134 = scmp.eq.s32.totalorder %s23, 1
      %p135 = por %p133, %p134
      %p137 = scmp.ne.s32.totalorder %s122, %s136
      %p138 = scmp.eq.s32.totalorder %s23, 0
      %p139 = por %p137, %p138
      %s141 = sadd.s32 %s140, 1
      %p144 = scmp.eq.s32.totalorder %s17, 1
      %p145 = scmp.ne.s32.totalorder %s140, %s142
      %p146 = scmp.eq.s32.totalorder %s17, 0
      %p147 = por %p145, %p146
      %p148 = scmp.ne.s32.totalorder %s140, %s142
      %p149 = scmp.eq.s32.totalorder %s22, 1
      %p150 = por %p148, %p149
      %p151 = scmp.ne.s32.totalorder %s142, %s143
      %p152 = scmp.eq.s32.totalorder %s22, 0
      %p153 = por %p151, %p152
      %p154 = scmp.ne.s32.totalorder %s142, %s143
      %p155 = scmp.eq.s32.totalorder %s23, 1
      %p156 = por %p154, %p155
      %p158 = scmp.ne.s32.totalorder %s143, %s157
      %p159 = scmp.eq.s32.totalorder %s23, 0
      %p160 = por %p158, %p159
      %s162 = sadd.s32 %s161, 1
      %p165 = scmp.eq.s32.totalorder %s17, 1
      %p166 = scmp.ne.s32.totalorder %s161, %s163
      %p167 = scmp.eq.s32.totalorder %s17, 0
      %p168 = por %p166, %p167
      %p169 = scmp.ne.s32.totalorder %s161, %s163
      %p170 = scmp.eq.s32.totalorder %s22, 1
      %p171 = por %p169, %p170
      %p172 = scmp.ne.s32.totalorder %s163, %s164
      %p173 = scmp.eq.s32.totalorder %s22, 0
      %p174 = por %p172, %p173
      %p175 = scmp.ne.s32.totalorder %s163, %s164
      %p176 = scmp.eq.s32.totalorder %s23, 1
      %p177 = por %p175, %p176
      %p179 = scmp.ne.s32.totalorder %s164, %s178
      %p180 = scmp.eq.s32.totalorder %s23, 0
      %p181 = por %p179, %p180
      %s183 = sadd.s32 %s182, 1
      %p186 = scmp.eq.s32.totalorder %s17, 1
      %p187 = scmp.ne.s32.totalorder %s182, %s184
      %p188 = scmp.eq.s32.totalorder %s17, 0
      %p189 = por %p187, %p188
      %p190 = scmp.ne.s32.totalorder %s182, %s184
      %p191 = scmp.eq.s32.totalorder %s22, 1
      %p192 = por %p190, %p191
      %p193 = scmp.ne.s32.totalorder %s184, %s185
      %p194 = scmp.eq.s32.totalorder %s22, 0
      %p195 = por %p193, %p194
      %p196 = scmp.ne.s32.totalorder %s184, %s185
      %p197 = scmp.eq.s32.totalorder %s23, 1
      %p198 = por %p196, %p197
      %p200 = scmp.ne.s32.totalorder %s185, %s199
      %p201 = scmp.eq.s32.totalorder %s23, 0
      %p202 = por %p200, %p201
      %s203 = ssub.s32 %s17, %s24
      %p204 = scmp.eq.s32.totalorder %s203, 0
      %s206 = sadd.s32 %s205, 1
      %s207 = scalar_select %p204, %s205, %s206
      %p210 = pneg %p204
      %p211 = scmp.eq.s32.totalorder %s17, 1
      %p212 = por %p210, %p211
      %p213 = scmp.ne.s32.totalorder %s205, %s208
      %p214 = scmp.eq.s32.totalorder %s17, 0
      %p215 = por %p213, %p214
      %p216 = scmp.ne.s32.totalorder %s205, %s208
      %p217 = scmp.eq.s32.totalorder %s22, 1
      %p218 = por %p216, %p217
      %p219 = scmp.ne.s32.totalorder %s208, %s209
      %p220 = scmp.eq.s32.totalorder %s22, 0
      %p221 = por %p219, %p220
      %p222 = scmp.ne.s32.totalorder %s208, %s209
      %p223 = scmp.eq.s32.totalorder %s23, 1
      %p224 = por %p222, %p223
      %p226 = scmp.ne.s32.totalorder %s209, %s225
      %p227 = scmp.eq.s32.totalorder %s23, 0
      %p228 = por %p226, %p227
      %p229 = scmp.le.s32.totalorder 1, %s17
      %p230 = scmp.lt.s32.totalorder %s17, 3
      %p231 = pnand %p229, %p230
      %p232 = pneg %p231
      // Predicated region
      $region9: #{t5_encoder_forward.1} parent=5 // pred_check
        _
      $region10: #{t5_encoder_forward.1} parent=5 // pred_check_branch
        %234 = sbr.rel (%p231) target = $region12
      $region11: #{t5_encoder_forward.1} parent=5 // pred_region
        %s235 = ssub.s32 %s17, 1
        // Predicated region
        $region13: #{t5_encoder_forward.1} parent=11 // pred_check
          %p236 = pneg %p90
        $region14: #{t5_encoder_forward.1} parent=11 // pred_check_branch
          %238 = sbr.rel (%p236) target = $region16
        $region15: #{t5_encoder_forward.1} parent=11 // pred_region
          _
        $region16: #{t5_encoder_forward.1} parent=11 // pred_fallthru
          _
        // Predicated region
        $region17: #{t5_encoder_forward.1} parent=11 // pred_check
          %p239 = pneg %p111
        $region18: #{t5_encoder_forward.1} parent=11 // pred_check_branch
          %241 = sbr.rel (%p239) target = $region20
        $region19: #{t5_encoder_forward.1} parent=11 // pred_region
          _
        $region20: #{t5_encoder_forward.1} parent=11 // pred_fallthru
          _
        // Predicated region
        $region21: #{t5_encoder_forward.1} parent=11 // pred_check
          %p242 = pneg %p132
        $region22: #{t5_encoder_forward.1} parent=11 // pred_check_branch
          %244 = sbr.rel (%p242) target = $region24
        $region23: #{t5_encoder_forward.1} parent=11 // pred_region
          _
        $region24: #{t5_encoder_forward.1} parent=11 // pred_fallthru
          _
        // Predicated region
        $region25: #{t5_encoder_forward.1} parent=11 // pred_check
          %p245 = pneg %p153
        $region26: #{t5_encoder_forward.1} parent=11 // pred_check_branch
          %247 = sbr.rel (%p245) target = $region28
        $region27: #{t5_encoder_forward.1} parent=11 // pred_region
          _
        $region28: #{t5_encoder_forward.1} parent=11 // pred_fallthru
          _
        // Predicated region
        $region29: #{t5_encoder_forward.1} parent=11 // pred_check
          %p248 = pneg %p174
        $region30: #{t5_encoder_forward.1} parent=11 // pred_check_branch
          %250 = sbr.rel (%p248) target = $region32
        $region31: #{t5_encoder_forward.1} parent=11 // pred_region
          _
        $region32: #{t5_encoder_forward.1} parent=11 // pred_fallthru
          _
        // Predicated region
        $region33: #{t5_encoder_forward.1} parent=11 // pred_check
          %p251 = pneg %p195
        $region34: #{t5_encoder_forward.1} parent=11 // pred_check_branch
          %253 = sbr.rel (%p251) target = $region36
        $region35: #{t5_encoder_forward.1} parent=11 // pred_region
          _
        $region36: #{t5_encoder_forward.1} parent=11 // pred_fallthru
          _
      $region12: #{t5_encoder_forward.1} parent=5 // pred_fallthru
        _
      %p254 = scmp.lt.s32.totalorder %s17, 2
      // Predicated region
      $region37: #{t5_encoder_forward.1} parent=5 // pred_check
        %p255 = pneg %p254
      $region38: #{t5_encoder_forward.1} parent=5 // pred_check_branch
        %257 = sbr.rel (%p255) target = $region40
      $region39: #{t5_encoder_forward.1} parent=5 // pred_region
        // Predicated region
        $region41: #{t5_encoder_forward.1} parent=39 // pred_check
          %p258 = pneg %p37
        $region42: #{t5_encoder_forward.1} parent=39 // pred_check_branch
          %260 = sbr.rel (%p258) target = $region44
        $region43: #{t5_encoder_forward.1} parent=39 // pred_region
          %p261 = scmp.lt.s32.totalorder %s17, 1
          %s262 = scalar_select %p261, %s17, 1
          %s263 = smul.addr %s262, 8
          %s264 = scalar_lea.vmem %s0, %s263
        $region44: #{t5_encoder_forward.1} parent=39 // pred_fallthru
          _
        // Predicated region
        $region45: #{t5_encoder_forward.1} parent=39 // pred_check
          %p265 = pneg %p63
        $region46: #{t5_encoder_forward.1} parent=39 // pred_check_branch
          %267 = sbr.rel (%p265) target = $region48
        $region47: #{t5_encoder_forward.1} parent=39 // pred_region
          %p268 = scmp.lt.s32.totalorder %s17, 1
          %s269 = scalar_select %p268, %s17, 1
          %s270 = scalar_lea.vmem %s1, %s269
        $region48: #{t5_encoder_forward.1} parent=39 // pred_fallthru
          _
      $region40: #{t5_encoder_forward.1} parent=5 // pred_fallthru
        _
      %p271 = scmp.le.s32.totalorder 1, %s17
      %p272 = scmp.lt.s32.totalorder %s17, 3
      %p273 = pnand %p271, %p272
      %p274 = pneg %p273
      // Predicated region
      $region49: #{t5_encoder_forward.1} parent=5 // pred_check
        _
      $region50: #{t5_encoder_forward.1} parent=5 // pred_check_branch
        %276 = sbr.rel (%p273) target = $region52
      $region51: #{t5_encoder_forward.1} parent=5 // pred_region
        %s277 = ssub.s32 %s17, 1
        %p278 = scmp.lt.s32.totalorder %s22, 1
        %s279 = scalar_select %p278, %s22, 1
        %s280 = smul.addr %s279, 8
        %s281 = scalar_lea.vmem %s0, %s280
        %p282 = pneg %p43
        %p283 = pneg %p40
        %p284 = scmp.lt.s32.totalorder %s22, 1
        %s285 = scalar_select %p284, %s22, 1
        %s286 = scalar_lea.vmem %s1, %s285
        %p287 = pneg %p69
        %p288 = pneg %p66
        %p289 = pneg %p90
        %p290 = pneg %p87
        %p291 = pneg %p111
        %p292 = pneg %p108
        %p293 = pneg %p132
        %p294 = pneg %p129
        %p295 = pneg %p153
        %p296 = pneg %p150
        %p297 = pneg %p174
        %p298 = pneg %p171
        %p299 = pneg %p195
        %p300 = pneg %p192
        %p301 = pneg %p221
        %p302 = pneg %p218
        %s303 = sand.u32 %s208, 1
        %s304 = scalar_lea.sflag [#allocation3], %s303
        %s305 = sand.u32 %s208, 1
        %s306 = smul.addr %s305, 8
        %s307 = scalar_lea.vmem [#allocation2], %s306
        %p308 = scmp.lt.s32.totalorder %s22, 1
        %s309 = scalar_select %p308, %s22, 1
        %s310 = smul.addr %s309, 8
        %s311 = scalar_lea.vmem %s0, %s310
        %p312 = scmp.lt.s32.totalorder %s22, 1
        %s313 = scalar_select %p312, %s22, 1
        %s314 = scalar_lea.vmem %s1, %s313
        %v316 = vld [vmem:[%s311] sm:$0xff]
        %v317 = vld [vmem:[%s2] sm:$0xf]
        %v318 = vld [vmem:[%s2 + $0x4] sm:$0xf]
        %v319 = vld [vmem:[%s2 + $0x8] sm:$0xf]
        %v320 = vld [vmem:[%s2 + $0xc] sm:$0xf]
        %v321 = vunpack.c.l.bf16 %v317
        %v322 = vunpack.c.l.bf16 %v318
        %v323 = vunpack.c.l.bf16 %v319
        %v324 = vunpack.c.l.bf16 %v320
        %v325 = vld [vmem:[%s314] sm:$0x1]
        %v327 = vperm.slane %v325, 0
        %v329 = vadd.f32 %v321, %v327
        %v330 = vadd.f32 %v322, %v327
        %v331 = vadd.f32 %v323, %v327
        %v332 = vadd.f32 %v324, %v327
        %v333 = vmul.f32 %v316, %v316
        %vm334 = vcmask 261120
        %v335 = vsel %vm334, %v333, 0.0
        %336 = vadd.xlane.f32.xlu0 %v335
        %v337 = vpop.xlane.xlu0 %336
        %v338 = vrcp.pop 32.0
        %v339 = vmul.f32 32.0, %v338
        %v340 = vsub.f32 1.0, %v339
        %v341 = vmul.f32 %v338, %v340
        %v342 = vadd.f32 %v338, %v341
        %vm343 = vweird.f32 %v338
        %v344 = vsel %vm343, %v338, %v342
        %v345 = vmul.f32 %v337, %v344
        %v346 = vadd.f32 %v345, 1e-06
        %v347 = vrsqrt.pop %v346
        %v348 = vmul.f32 %v347, %v346
        %v349 = vmul.f32 %v348, %v347
        %v350 = vmul.f32 0.5, %v349
        %v351 = vsub.f32 1.5, %v350
        %v352 = vmul.f32 %v347, %v351
        %vm353 = vweird.f32 %v346
        %vm354 = vweird.f32 %v347
        %vm355 = vmor %vm353, %vm354
        %v356 = vsel %vm355, %v347, %v352
        %v357 = vmul.f32 %v316, %v356
        %v358 = vpack.c.bf16 %v357, %v357
        %v359 = vld [vmem:[%s3] sm:$0xf]
        %v360 = vld [vmem:[%s3 + $0x4] sm:$0xf]
        %v361 = vld [vmem:[%s3 + $0x8] sm:$0xf]
        %v362 = vld [vmem:[%s3 + $0xc] sm:$0xf]
        %v367 = vunpack.c.l.b16 %v359
        %v368 = vunpack.c.l.b16 %v360
        %v369 = vunpack.c.l.b16 %v361
        %v370 = vunpack.c.l.b16 %v362
        %v371 = vpack.c.b16 %v368, %v367
        %v372 = vpack.c.b16 %v370, %v369
        %v376 = vsel %vm334, %v358, 0
        %378 = vmatpush.bf16.msra.mxu0 0
        %379 = vmatpush.bf16.msra.mxu0 0
        %380 = vmatpush.bf16.msra.mxu0 0
        %381 = vmatpush.bf16.msra.mxu0 0
        %382 = vmatpush.bf16.msra.mxu0 0
        %383 = vmatpush.bf16.msra.mxu0 0
        %384 = vmatpush.bf16.msra.mxu0 %v372
        %385 = vmatpush.bf16.msra.mxu0 %v371
        %386 = vmatmul.bf16.gmra.mxu0 %v376
        %v387 = vpop.f32.mrf.mxu0
        %v388 = vadd.f32 0.0, %v387
        %v389 = vpop.f32.mrf.mxu0
        %390 = vdwg.mxu0
        %392 = vrot.lane.b32.xlu0 %v388, 96
        %v393 = vpop.permute.xlu0 %392
        %vm394 = vcmask 64512
        %v395 = vsel %vm394, %v388, 0
        %v397 = vsel %vm394, %v393, 0
        %399 = vmatpush.xpose.msra.mxu0 0.0
        %400 = vmatpush.xpose.msra.mxu0 0.0
        %401 = vmatpush.xpose.msra.mxu0 0.0
        %402 = vmatpush.xpose.msra.mxu0 0.0
        %403 = vmatpush.xpose.msra.mxu0 0.0
        %404 = vmatpush.xpose.msra.mxu0 0.0
        %405 = vmatpush.xpose.msra.mxu0 0.0
        %406 = vmatpush.xpose.msra.mxu0 0.0
        %407 = vmatpush.xpose.msra.mxu0 0.0
        %408 = vmatpush.xpose.msra.mxu0 0.0
        %409 = vmatpush.xpose.msra.mxu0 0.0
        %410 = vmatpush.xpose.msra.mxu0 0.0
        %411 = vmatpush.xpose.msra.mxu0 0.0
        %412 = vmatpush.xpose.msra.mxu0 0.0
        %413 = vmatpush.xpose.msra.mxu0 0.0
        %414 = vmatpush.xpose.msra.mxu0 %v397
        %415 = vmatmul.f32.gmra.mxu0 %v395
        %v416 = vpop.f32.mrf.mxu0
        %v417 = vadd.f32 %v329, %v416
        %418 = vdwg.mxu0
        %v419 = vsel %vm394, %v417, -inf
        %420 = vmax.xlane.f32.xlu0 %v419
        %v421 = vpop.xlane.xlu0 %420
        %v422 = vsub.f32 %v417, %v421
        %v423 = vmul.f32 %v422, 1.442695
        %v424 = vpow.pop %v423
        %v425 = vsel %vm394, %v424, 0.0
        %426 = vadd.xlane.f32.xlu0 %v425
        %v427 = vpop.xlane.xlu0 %426
        %v428 = vrcp.pop %v427
        %v429 = vmul.f32 %v427, %v428
        %v430 = vsub.f32 1.0, %v429
        %v431 = vmul.f32 %v428, %v430
        %v432 = vadd.f32 %v428, %v431
        %vm433 = vweird.f32 %v427
        %vm434 = vweird.f32 %v428
        %vm435 = vmor %vm433, %vm434
        %v436 = vsel %vm435, %v428, %v432
        %v437 = vand.u32 2147483647, %v427
        %vm438 = vcmp.eq.f32.partialorder %v437, 8.507059e+37
        %v439 = vand.u32 %v427, 2147483648
        %v440 = vor.u32 1.1754944e-38, %v439
        %v441 = vsel %vm438, %v440, %v436
        %v442 = vmul.f32 %v424, %v441
        %v443 = vpack.c.bf16 %v442, %v442
        %v444 = vpack.c.bf16 %v388, %v388
        %446 = vrot.lane.b32.xlu0 %v444, 64
        %v447 = vpop.permute.xlu0 %446
        %v449 = vsel %vm394, %v443, 0
        %vm451 = vcmask 1043456
        %v453 = vsel %vm451, %v447, 0
        %455 = vmatpush.bf16.msra.mxu0 0
        %456 = vmatpush.bf16.msra.mxu0 0
        %457 = vmatpush.bf16.msra.mxu0 0
        %458 = vmatpush.bf16.msra.mxu0 0
        %459 = vmatpush.bf16.msra.mxu0 0
        %460 = vmatpush.bf16.msra.mxu0 0
        %461 = vmatpush.bf16.msra.mxu0 0
        %462 = vmatpush.bf16.msra.mxu0 %v453
        %463 = vmatmul.bf16.gmra.mxu0 %v449
        %v464 = vpop.f32.mrf.mxu0
        %v465 = vadd.f32 0.0, %v464
        %v466 = vpop.f32.mrf.mxu0
        %467 = vdwg.mxu0
        %468 = vrot.lane.b32.xlu0 %v388, 120
        %v469 = vpop.permute.xlu0 %468
        %470 = vrot.lane.b32.xlu0 %v388, 88
        %v471 = vpop.permute.xlu0 %470
        %v472 = vsel %vm394, %v469, 0
        %v474 = vsel %vm394, %v471, 0
        %476 = vmatpush.xpose.msra.mxu0 0.0
        %477 = vmatpush.xpose.msra.mxu0 0.0
        %478 = vmatpush.xpose.msra.mxu0 0.0
        %479 = vmatpush.xpose.msra.mxu0 0.0
        %480 = vmatpush.xpose.msra.mxu0 0.0
        %481 = vmatpush.xpose.msra.mxu0 0.0
        %482 = vmatpush.xpose.msra.mxu0 0.0
        %483 = vmatpush.xpose.msra.mxu0 0.0
        %484 = vmatpush.xpose.msra.mxu0 0.0
        %485 = vmatpush.xpose.msra.mxu0 0.0
        %486 = vmatpush.xpose.msra.mxu0 0.0
        %487 = vmatpush.xpose.msra.mxu0 0.0
        %488 = vmatpush.xpose.msra.mxu0 0.0
        %489 = vmatpush.xpose.msra.mxu0 0.0
        %490 = vmatpush.xpose.msra.mxu0 0.0
        %491 = vmatpush.xpose.msra.mxu0 %v474
        %492 = vmatmul.f32.gmra.mxu0 %v472
        %v493 = vpop.f32.mrf.mxu0
        %v494 = vadd.f32 %v330, %v493
        %495 = vdwg.mxu0
        %v496 = vsel %vm394, %v494, -inf
        %497 = vmax.xlane.f32.xlu0 %v496
        %v498 = vpop.xlane.xlu0 %497
        %v499 = vsub.f32 %v494, %v498
        %v500 = vmul.f32 %v499, 1.442695
        %v501 = vpow.pop %v500
        %v502 = vsel %vm394, %v501, 0.0
        %503 = vadd.xlane.f32.xlu0 %v502
        %v504 = vpop.xlane.xlu0 %503
        %v505 = vrcp.pop %v504
        %v506 = vmul.f32 %v504, %v505
        %v507 = vsub.f32 1.0, %v506
        %v508 = vmul.f32 %v505, %v507
        %v509 = vadd.f32 %v505, %v508
        %vm510 = vweird.f32 %v504
        %vm511 = vweird.f32 %v505
        %vm512 = vmor %vm510, %vm511
        %v513 = vsel %vm512, %v505, %v509
        %v514 = vand.u32 2147483647, %v504
        %vm515 = vcmp.eq.f32.partialorder %v514, 8.507059e+37
        %v516 = vand.u32 %v504, 2147483648
        %v517 = vor.u32 1.1754944e-38, %v516
        %v518 = vsel %vm515, %v517, %v513
        %v519 = vmul.f32 %v501, %v518
        %v520 = vpack.c.bf16 %v519, %v519
        %521 = vrot.lane.b32.xlu0 %v444, 56
        %v522 = vpop.permute.xlu0 %521
        %v524 = vsel %vm394, %v520, 0
        %v527 = vsel %vm451, %v522, 0
        %529 = vmatpush.bf16.msra.mxu0 0
        %530 = vmatpush.bf16.msra.mxu0 0
        %531 = vmatpush.bf16.msra.mxu0 0
        %532 = vmatpush.bf16.msra.mxu0 0
        %533 = vmatpush.bf16.msra.mxu0 0
        %534 = vmatpush.bf16.msra.mxu0 0
        %535 = vmatpush.bf16.msra.mxu0 0
        %536 = vmatpush.bf16.msra.mxu0 %v527
        %537 = vmatmul.bf16.gmra.mxu0 %v524
        %v538 = vpop.f32.mrf.mxu0
        %v539 = vadd.f32 0.0, %v538
        %v540 = vpop.f32.mrf.mxu0
        %541 = vdwg.mxu0
        %542 = vrot.lane.b32.xlu0 %v388, 112
        %v543 = vpop.permute.xlu0 %542
        %544 = vrot.lane.b32.xlu0 %v388, 80
        %v545 = vpop.permute.xlu0 %544
        %v546 = vsel %vm394, %v543, 0
        %v548 = vsel %vm394, %v545, 0
        %550 = vmatpush.xpose.msra.mxu0 0.0
        %551 = vmatpush.xpose.msra.mxu0 0.0
        %552 = vmatpush.xpose.msra.mxu0 0.0
        %553 = vmatpush.xpose.msra.mxu0 0.0
        %554 = vmatpush.xpose.msra.mxu0 0.0
        %555 = vmatpush.xpose.msra.mxu0 0.0
        %556 = vmatpush.xpose.msra.mxu0 0.0
        %557 = vmatpush.xpose.msra.mxu0 0.0
        %558 = vmatpush.xpose.msra.mxu0 0.0
        %559 = vmatpush.xpose.msra.mxu0 0.0
        %560 = vmatpush.xpose.msra.mxu0 0.0
        %561 = vmatpush.xpose.msra.mxu0 0.0
        %562 = vmatpush.xpose.msra.mxu0 0.0
        %563 = vmatpush.xpose.msra.mxu0 0.0
        %564 = vmatpush.xpose.msra.mxu0 0.0
        %565 = vmatpush.xpose.msra.mxu0 %v548
        %566 = vmatmul.f32.gmra.mxu0 %v546
        %v567 = vpop.f32.mrf.mxu0
        %v568 = vadd.f32 %v331, %v567
        %569 = vdwg.mxu0
        %v570 = vsel %vm394, %v568, -inf
        %571 = vmax.xlane.f32.xlu0 %v570
        %v572 = vpop.xlane.xlu0 %571
        %v573 = vsub.f32 %v568, %v572
        %v574 = vmul.f32 %v573, 1.442695
        %v575 = vpow.pop %v574
        %v576 = vsel %vm394, %v575, 0.0
        %577 = vadd.xlane.f32.xlu0 %v576
        %v578 = vpop.xlane.xlu0 %577
        %v579 = vrcp.pop %v578
        %v580 = vmul.f32 %v578, %v579
        %v581 = vsub.f32 1.0, %v580
        %v582 = vmul.f32 %v579, %v581
        %v583 = vadd.f32 %v579, %v582
        %vm584 = vweird.f32 %v578
        %vm585 = vweird.f32 %v579
        %vm586 = vmor %vm584, %vm585
        %v587 = vsel %vm586, %v579, %v583
        %v588 = vand.u32 2147483647, %v578
        %vm589 = vcmp.eq.f32.partialorder %v588, 8.507059e+37
        %v590 = vand.u32 %v578, 2147483648
        %v591 = vor.u32 1.1754944e-38, %v590
        %v592 = vsel %vm589, %v591, %v587
        %v593 = vmul.f32 %v575, %v592
        %v594 = vpack.c.bf16 %v593, %v593
        %595 = vrot.lane.b32.xlu0 %v444, 48
        %v596 = vpop.permute.xlu0 %595
        %v598 = vsel %vm394, %v594, 0
        %v601 = vsel %vm451, %v596, 0
        %603 = vmatpush.bf16.msra.mxu0 0
        %604 = vmatpush.bf16.msra.mxu0 0
        %605 = vmatpush.bf16.msra.mxu0 0
        %606 = vmatpush.bf16.msra.mxu0 0
        %607 = vmatpush.bf16.msra.mxu0 0
        %608 = vmatpush.bf16.msra.mxu0 0
        %609 = vmatpush.bf16.msra.mxu0 0
        %610 = vmatpush.bf16.msra.mxu0 %v601
        %611 = vmatmul.bf16.gmra.mxu0 %v598
        %v612 = vpop.f32.mrf.mxu0
        %v613 = vadd.f32 0.0, %v612
        %v614 = vpop.f32.mrf.mxu0
        %615 = vdwg.mxu0
        %616 = vrot.lane.b32.xlu0 %v388, 104
        %v617 = vpop.permute.xlu0 %616
        %618 = vrot.lane.b32.xlu0 %v388, 72
        %v619 = vpop.permute.xlu0 %618
        %v620 = vsel %vm394, %v617, 0
        %v622 = vsel %vm394, %v619, 0
        %624 = vmatpush.xpose.msra.mxu0 0.0
        %625 = vmatpush.xpose.msra.mxu0 0.0
        %626 = vmatpush.xpose.msra.mxu0 0.0
        %627 = vmatpush.xpose.msra.mxu0 0.0
        %628 = vmatpush.xpose.msra.mxu0 0.0
        %629 = vmatpush.xpose.msra.mxu0 0.0
        %630 = vmatpush.xpose.msra.mxu0 0.0
        %631 = vmatpush.xpose.msra.mxu0 0.0
        %632 = vmatpush.xpose.msra.mxu0 0.0
        %633 = vmatpush.xpose.msra.mxu0 0.0
        %634 = vmatpush.xpose.msra.mxu0 0.0
        %635 = vmatpush.xpose.msra.mxu0 0.0
        %636 = vmatpush.xpose.msra.mxu0 0.0
        %637 = vmatpush.xpose.msra.mxu0 0.0
        %638 = vmatpush.xpose.msra.mxu0 0.0
        %639 = vmatpush.xpose.msra.mxu0 %v622
        %640 = vmatmul.f32.gmra.mxu0 %v620
        %v641 = vpop.f32.mrf.mxu0
        %v642 = vadd.f32 %v332, %v641
        %643 = vdwg.mxu0
        %v644 = vsel %vm394, %v642, -inf
        %645 = vmax.xlane.f32.xlu0 %v644
        %v646 = vpop.xlane.xlu0 %645
        %v647 = vsub.f32 %v642, %v646
        %v648 = vmul.f32 %v647, 1.442695
        %v649 = vpow.pop %v648
        %v650 = vsel %vm394, %v649, 0.0
        %651 = vadd.xlane.f32.xlu0 %v650
        %v652 = vpop.xlane.xlu0 %651
        %v653 = vrcp.pop %v652
        %v654 = vmul.f32 %v652, %v653
        %v655 = vsub.f32 1.0, %v654
        %v656 = vmul.f32 %v653, %v655
        %v657 = vadd.f32 %v653, %v656
        %vm658 = vweird.f32 %v652
        %vm659 = vweird.f32 %v653
        %vm660 = vmor %vm658, %vm659
        %v661 = vsel %vm660, %v653, %v657
        %v662 = vand.u32 2147483647, %v652
        %vm663 = vcmp.eq.f32.partialorder %v662, 8.507059e+37
        %v664 = vand.u32 %v652, 2147483648
        %v665 = vor.u32 1.1754944e-38, %v664
        %v666 = vsel %vm663, %v665, %v661
        %v667 = vmul.f32 %v649, %v666
        %v668 = vpack.c.bf16 %v667, %v667
        %669 = vrot.lane.b32.xlu0 %v444, 40
        %v670 = vpop.permute.xlu0 %669
        %v672 = vsel %vm394, %v668, 0
        %v675 = vsel %vm451, %v670, 0
        %677 = vmatpush.bf16.msra.mxu0 0
        %678 = vmatpush.bf16.msra.mxu0 0
        %679 = vmatpush.bf16.msra.mxu0 0
        %680 = vmatpush.bf16.msra.mxu0 0
        %681 = vmatpush.bf16.msra.mxu0 0
        %682 = vmatpush.bf16.msra.mxu0 0
        %683 = vmatpush.bf16.msra.mxu0 0
        %684 = vmatpush.bf16.msra.mxu0 %v675
        %685 = vmatmul.bf16.gmra.mxu0 %v672
        %v686 = vpop.f32.mrf.mxu0
        %v687 = vadd.f32 0.0, %v686
        %v688 = vpop.f32.mrf.mxu0
        %689 = vdwg.mxu0
        %691 = vrot.lane.b32.xlu0 %v539, 8
        %v692 = vpop.permute.xlu0 %691
        %695 = vrot.lane.b32.xlu0 %v613, 16
        %v696 = vpop.permute.xlu0 %695
        %699 = vrot.lane.b32.xlu0 %v687, 24
        %v700 = vpop.permute.xlu0 %699
        %v702 = vsel %vm394, %v465, %v692
        %vm703 = vcmask 130048
        %v704 = vsel %vm703, %v702, %v696
        %vm705 = vcmask 195584
        %v706 = vsel %vm705, %v704, %v700
        %v707 = vpack.c.bf16 %v706, %v706
        %v708 = vld [vmem:[%s4] sm:$0xf]
        %v709 = vld [vmem:[%s4 + $0x4] sm:$0xf]
        %v710 = vld [vmem:[%s4 + $0x8] sm:$0xf]
        %v711 = vld [vmem:[%s4 + $0xc] sm:$0xf]
        %v716 = vunpack.c.l.b16 %v708
        %v717 = vunpack.c.l.b16 %v709
        %v718 = vunpack.c.l.b16 %v710
        %v719 = vunpack.c.l.b16 %v711
        %v720 = vpack.c.b16 %v717, %v716
        %v721 = vpack.c.b16 %v719, %v718
        %v725 = vsel %vm334, %v707, 0
        %727 = vmatpush.bf16.msra.mxu0 0
        %728 = vmatpush.bf16.msra.mxu0 0
        %729 = vmatpush.bf16.msra.mxu0 0
        %730 = vmatpush.bf16.msra.mxu0 0
        %731 = vmatpush.bf16.msra.mxu0 0
        %732 = vmatpush.bf16.msra.mxu0 0
        %733 = vmatpush.bf16.msra.mxu0 %v721
        %734 = vmatpush.bf16.msra.mxu0 %v720
        %735 = vmatmul.bf16.gmra.mxu0 %v725
        %v736 = vpop.f32.mrf.mxu0
        %v737 = vadd.f32 0.0, %v736
        %v738 = vpop.f32.mrf.mxu0
        %739 = vdwg.mxu0
        %v740 = vadd.f32 %v316, %v737
        %v741 = vmul.f32 %v740, %v740
        %v742 = vsel %vm334, %v741, 0.0
        %743 = vadd.xlane.f32.xlu0 %v742
        %v744 = vpop.xlane.xlu0 %743
        %v745 = vmul.f32 %v744, %v344
        %v746 = vadd.f32 %v745, 1e-06
        %v747 = vrsqrt.pop %v746
        %v748 = vmul.f32 %v747, %v746
        %v749 = vmul.f32 %v748, %v747
        %v750 = vmul.f32 0.5, %v749
        %v751 = vsub.f32 1.5, %v750
        %v752 = vmul.f32 %v747, %v751
        %vm753 = vweird.f32 %v746
        %vm754 = vweird.f32 %v747
        %vm755 = vmor %vm753, %vm754
        %v756 = vsel %vm755, %v747, %v752
        %v757 = vmul.f32 %v740, %v756
        %v758 = vpack.c.bf16 %v757, %v757
        %v759 = vld [vmem:[%s5] sm:$0xf]
        %v760 = vld [vmem:[%s5 + $0x4] sm:$0xf]
        %v761 = vld [vmem:[%s5 + $0x8] sm:$0xf]
        %v762 = vld [vmem:[%s5 + $0xc] sm:$0xf]
        %v767 = vunpack.c.l.b16 %v759
        %v768 = vunpack.c.l.b16 %v760
        %v769 = vunpack.c.l.b16 %v761
        %v770 = vunpack.c.l.b16 %v762
        %v771 = vpack.c.b16 %v768, %v767
        %v772 = vpack.c.b16 %v770, %v769
        %v776 = vsel %vm334, %v758, 0
        %778 = vmatpush.bf16.msra.mxu0 0
        %779 = vmatpush.bf16.msra.mxu0 0
        %780 = vmatpush.bf16.msra.mxu0 0
        %781 = vmatpush.bf16.msra.mxu0 0
        %782 = vmatpush.bf16.msra.mxu0 0
        %783 = vmatpush.bf16.msra.mxu0 0
        %784 = vmatpush.bf16.msra.mxu0 %v772
        %785 = vmatpush.bf16.msra.mxu0 %v771
        %786 = vmatmul.bf16.gmra.mxu0 %v776
        %v787 = vpop.f32.mrf.mxu0
        %v788 = vadd.f32 0.0, %v787
        %v789 = vpop.f32.mrf.mxu0
        %790 = vdwg.mxu0
        %v791 = vmax.f32 %v788, 0.0
        %v792 = vpack.c.bf16 %v791, %v791
        %v793 = vld [vmem:[%s6] sm:$0xf]
        %v794 = vld [vmem:[%s6 + $0x4] sm:$0xf]
        %v795 = vld [vmem:[%s6 + $0x8] sm:$0xf]
        %v796 = vld [vmem:[%s6 + $0xc] sm:$0xf]
        %v797 = vld [vmem:[%s6 + $0x10] sm:$0xf]
        %v798 = vld [vmem:[%s6 + $0x14] sm:$0xf]
        %v799 = vld [vmem:[%s6 + $0x18] sm:$0xf]
        %v800 = vld [vmem:[%s6 + $0x1c] sm:$0xf]
        %v809 = vunpack.c.l.b16 %v793
        %v810 = vunpack.c.l.b16 %v794
        %v811 = vunpack.c.l.b16 %v795
        %v812 = vunpack.c.l.b16 %v796
        %v813 = vunpack.c.l.b16 %v797
        %v814 = vunpack.c.l.b16 %v798
        %v815 = vunpack.c.l.b16 %v799
        %v816 = vunpack.c.l.b16 %v800
        %v817 = vpack.c.b16 %v810, %v809
        %v818 = vpack.c.b16 %v812, %v811
        %v819 = vpack.c.b16 %v814, %v813
        %v820 = vpack.c.b16 %v816, %v815
        %vm825 = vcmask 523264
        %v827 = vsel %vm825, %v792, 0
        %829 = vmatpush.bf16.msra.mxu0 0
        %830 = vmatpush.bf16.msra.mxu0 0
        %831 = vmatpush.bf16.msra.mxu0 0
        %832 = vmatpush.bf16.msra.mxu0 0
        %833 = vmatpush.bf16.msra.mxu0 %v820
        %834 = vmatpush.bf16.msra.mxu0 %v819
        %835 = vmatpush.bf16.msra.mxu0 %v818
        %836 = vmatpush.bf16.msra.mxu0 %v817
        %837 = vmatmul.bf16.gmra.mxu0 %v827
        %v838 = vpop.f32.mrf.mxu0
        %v839 = vadd.f32 0.0, %v838
        %v840 = vpop.f32.mrf.mxu0
        %841 = vdwg.mxu0
        %v842 = vadd.f32 %v740, %v839
        %v843 = vmul.f32 %v842, %v842
        %v844 = vsel %vm334, %v843, 0.0
        %845 = vadd.xlane.f32.xlu0 %v844
        %v846 = vpop.xlane.xlu0 %845
        %v847 = vmul.f32 %v846, %v344
        %v848 = vadd.f32 %v847, 1e-06
        %v849 = vrsqrt.pop %v848
        %v850 = vmul.f32 %v849, %v848
        %v851 = vmul.f32 %v850, %v849
        %v852 = vmul.f32 0.5, %v851
        %v853 = vsub.f32 1.5, %v852
        %v854 = vmul.f32 %v849, %v853
        %vm855 = vweird.f32 %v848
        %vm856 = vweird.f32 %v849
        %vm857 = vmor %vm855, %vm856
        %v858 = vsel %vm857, %v849, %v854
        %v859 = vmul.f32 %v842, %v858
        %v860 = vpack.c.bf16 %v859, %v859
        %s861 = scalar_lea.vmem %s3, 16
        %v862 = vld [vmem:[%s861] sm:$0xf]
        %v863 = vld [vmem:[%s861 + $0x4] sm:$0xf]
        %v864 = vld [vmem:[%s861 + $0x8] sm:$0xf]
        %v865 = vld [vmem:[%s861 + $0xc] sm:$0xf]
        %v870 = vunpack.c.l.b16 %v862
        %v871 = vunpack.c.l.b16 %v863
        %v872 = vunpack.c.l.b16 %v864
        %v873 = vunpack.c.l.b16 %v865
        %v874 = vpack.c.b16 %v871, %v870
        %v875 = vpack.c.b16 %v873, %v872
        %v879 = vsel %vm334, %v860, 0
        %881 = vmatpush.bf16.msra.mxu0 0
        %882 = vmatpush.bf16.msra.mxu0 0
        %883 = vmatpush.bf16.msra.mxu0 0
        %884 = vmatpush.bf16.msra.mxu0 0
        %885 = vmatpush.bf16.msra.mxu0 0
        %886 = vmatpush.bf16.msra.mxu0 0
        %887 = vmatpush.bf16.msra.mxu0 %v875
        %888 = vmatpush.bf16.msra.mxu0 %v874
        %889 = vmatmul.bf16.gmra.mxu0 %v879
        %v890 = vpop.f32.mrf.mxu0
        %v891 = vadd.f32 0.0, %v890
        %v892 = vpop.f32.mrf.mxu0
        %893 = vdwg.mxu0
        %895 = vrot.lane.b32.xlu0 %v891, 96
        %v896 = vpop.permute.xlu0 %895
        %v897 = vsel %vm394, %v891, 0
        %v899 = vsel %vm394, %v896, 0
        %901 = vmatpush.xpose.msra.mxu0 0.0
        %902 = vmatpush.xpose.msra.mxu0 0.0
        %903 = vmatpush.xpose.msra.mxu0 0.0
        %904 = vmatpush.xpose.msra.mxu0 0.0
        %905 = vmatpush.xpose.msra.mxu0 0.0
        %906 = vmatpush.xpose.msra.mxu0 0.0
        %907 = vmatpush.xpose.msra.mxu0 0.0
        %908 = vmatpush.xpose.msra.mxu0 0.0
        %909 = vmatpush.xpose.msra.mxu0 0.0
        %910 = vmatpush.xpose.msra.mxu0 0.0
        %911 = vmatpush.xpose.msra.mxu0 0.0
        %912 = vmatpush.xpose.msra.mxu0 0.0
        %913 = vmatpush.xpose.msra.mxu0 0.0
        %914 = vmatpush.xpose.msra.mxu0 0.0
        %915 = vmatpush.xpose.msra.mxu0 0.0
        %916 = vmatpush.xpose.msra.mxu0 %v899
        %917 = vmatmul.f32.gmra.mxu0 %v897
        %v918 = vpop.f32.mrf.mxu0
        %v919 = vadd.f32 %v329, %v918
        %920 = vdwg.mxu0
        %v921 = vsel %vm394, %v919, -inf
        %922 = vmax.xlane.f32.xlu0 %v921
        %v923 = vpop.xlane.xlu0 %922
        %v924 = vsub.f32 %v919, %v923
        %v925 = vmul.f32 %v924, 1.442695
        %v926 = vpow.pop %v925
        %v927 = vsel %vm394, %v926, 0.0
        %928 = vadd.xlane.f32.xlu0 %v927
        %v929 = vpop.xlane.xlu0 %928
        %v930 = vrcp.pop %v929
        %v931 = vmul.f32 %v929, %v930
        %v932 = vsub.f32 1.0, %v931
        %v933 = vmul.f32 %v930, %v932
        %v934 = vadd.f32 %v930, %v933
        %vm935 = vweird.f32 %v929
        %vm936 = vweird.f32 %v930
        %vm937 = vmor %vm935, %vm936
        %v938 = vsel %vm937, %v930, %v934
        %v939 = vand.u32 2147483647, %v929
        %vm940 = vcmp.eq.f32.partialorder %v939, 8.507059e+37
        %v941 = vand.u32 %v929, 2147483648
        %v942 = vor.u32 1.1754944e-38, %v941
        %v943 = vsel %vm940, %v942, %v938
        %v944 = vmul.f32 %v926, %v943
        %v945 = vpack.c.bf16 %v944, %v944
        %v946 = vpack.c.bf16 %v891, %v891
        %948 = vrot.lane.b32.xlu0 %v946, 64
        %v949 = vpop.permute.xlu0 %948
        %v951 = vsel %vm394, %v945, 0
        %v954 = vsel %vm451, %v949, 0
        %956 = vmatpush.bf16.msra.mxu0 0
        %957 = vmatpush.bf16.msra.mxu0 0
        %958 = vmatpush.bf16.msra.mxu0 0
        %959 = vmatpush.bf16.msra.mxu0 0
        %960 = vmatpush.bf16.msra.mxu0 0
        %961 = vmatpush.bf16.msra.mxu0 0
        %962 = vmatpush.bf16.msra.mxu0 0
        %963 = vmatpush.bf16.msra.mxu0 %v954
        %964 = vmatmul.bf16.gmra.mxu0 %v951
        %v965 = vpop.f32.mrf.mxu0
        %v966 = vadd.f32 0.0, %v965
        %v967 = vpop.f32.mrf.mxu0
        %968 = vdwg.mxu0
        %969 = vrot.lane.b32.xlu0 %v891, 120
        %v970 = vpop.permute.xlu0 %969
        %971 = vrot.lane.b32.xlu0 %v891, 88
        %v972 = vpop.permute.xlu0 %971
        %v973 = vsel %vm394, %v970, 0
        %v975 = vsel %vm394, %v972, 0
        %977 = vmatpush.xpose.msra.mxu0 0.0
        %978 = vmatpush.xpose.msra.mxu0 0.0
        %979 = vmatpush.xpose.msra.mxu0 0.0
        %980 = vmatpush.xpose.msra.mxu0 0.0
        %981 = vmatpush.xpose.msra.mxu0 0.0
        %982 = vmatpush.xpose.msra.mxu0 0.0
        %983 = vmatpush.xpose.msra.mxu0 0.0
        %984 = vmatpush.xpose.msra.mxu0 0.0
        %985 = vmatpush.xpose.msra.mxu0 0.0
        %986 = vmatpush.xpose.msra.mxu0 0.0
        %987 = vmatpush.xpose.msra.mxu0 0.0
        %988 = vmatpush.xpose.msra.mxu0 0.0
        %989 = vmatpush.xpose.msra.mxu0 0.0
        %990 = vmatpush.xpose.msra.mxu0 0.0
        %991 = vmatpush.xpose.msra.mxu0 0.0
        %992 = vmatpush.xpose.msra.mxu0 %v975
        %993 = vmatmul.f32.gmra.mxu0 %v973
        %v994 = vpop.f32.mrf.mxu0
        %v995 = vadd.f32 %v330, %v994
        %996 = vdwg.mxu0
        %v997 = vsel %vm394, %v995, -inf
        %998 = vmax.xlane.f32.xlu0 %v997
        %v999 = vpop.xlane.xlu0 %998
        %v1000 = vsub.f32 %v995, %v999
        %v1001 = vmul.f32 %v1000, 1.442695
        %v1002 = vpow.pop %v1001
        %v1003 = vsel %vm394, %v1002, 0.0
        %1004 = vadd.xlane.f32.xlu0 %v1003
        %v1005 = vpop.xlane.xlu0 %1004
        %v1006 = vrcp.pop %v1005
        %v1007 = vmul.f32 %v1005, %v1006
        %v1008 = vsub.f32 1.0, %v1007
        %v1009 = vmul.f32 %v1006, %v1008
        %v1010 = vadd.f32 %v1006, %v1009
        %vm1011 = vweird.f32 %v1005
        %vm1012 = vweird.f32 %v1006
        %vm1013 = vmor %vm1011, %vm1012
        %v1014 = vsel %vm1013, %v1006, %v1010
        %v1015 = vand.u32 2147483647, %v1005
        %vm1016 = vcmp.eq.f32.partialorder %v1015, 8.507059e+37
        %v1017 = vand.u32 %v1005, 2147483648
        %v1018 = vor.u32 1.1754944e-38, %v1017
        %v1019 = vsel %vm1016, %v1018, %v1014
        %v1020 = vmul.f32 %v1002, %v1019
        %v1021 = vpack.c.bf16 %v1020, %v1020
        %1022 = vrot.lane.b32.xlu0 %v946, 56
        %v1023 = vpop.permute.xlu0 %1022
        %v1025 = vsel %vm394, %v1021, 0
        %v1028 = vsel %vm451, %v1023, 0
        %1030 = vmatpush.bf16.msra.mxu0 0
        %1031 = vmatpush.bf16.msra.mxu0 0
        %1032 = vmatpush.bf16.msra.mxu0 0
        %1033 = vmatpush.bf16.msra.mxu0 0
        %1034 = vmatpush.bf16.msra.mxu0 0
        %1035 = vmatpush.bf16.msra.mxu0 0
        %1036 = vmatpush.bf16.msra.mxu0 0
        %1037 = vmatpush.bf16.msra.mxu0 %v1028
        %1038 = vmatmul.bf16.gmra.mxu0 %v1025
        %v1039 = vpop.f32.mrf.mxu0
        %v1040 = vadd.f32 0.0, %v1039
        %v1041 = vpop.f32.mrf.mxu0
        %1042 = vdwg.mxu0
        %1043 = vrot.lane.b32.xlu0 %v891, 112
        %v1044 = vpop.permute.xlu0 %1043
        %1045 = vrot.lane.b32.xlu0 %v891, 80
        %v1046 = vpop.permute.xlu0 %1045
        %v1047 = vsel %vm394, %v1044, 0
        %v1049 = vsel %vm394, %v1046, 0
        %1051 = vmatpush.xpose.msra.mxu0 0.0
        %1052 = vmatpush.xpose.msra.mxu0 0.0
        %1053 = vmatpush.xpose.msra.mxu0 0.0
        %1054 = vmatpush.xpose.msra.mxu0 0.0
        %1055 = vmatpush.xpose.msra.mxu0 0.0
        %1056 = vmatpush.xpose.msra.mxu0 0.0
        %1057 = vmatpush.xpose.msra.mxu0 0.0
        %1058 = vmatpush.xpose.msra.mxu0 0.0
        %1059 = vmatpush.xpose.msra.mxu0 0.0
        %1060 = vmatpush.xpose.msra.mxu0 0.0
        %1061 = vmatpush.xpose.msra.mxu0 0.0
        %1062 = vmatpush.xpose.msra.mxu0 0.0
        %1063 = vmatpush.xpose.msra.mxu0 0.0
        %1064 = vmatpush.xpose.msra.mxu0 0.0
        %1065 = vmatpush.xpose.msra.mxu0 0.0
        %1066 = vmatpush.xpose.msra.mxu0 %v1049
        %1067 = vmatmul.f32.gmra.mxu0 %v1047
        %v1068 = vpop.f32.mrf.mxu0
        %v1069 = vadd.f32 %v331, %v1068
        %1070 = vdwg.mxu0
        %v1071 = vsel %vm394, %v1069, -inf
        %1072 = vmax.xlane.f32.xlu0 %v1071
        %v1073 = vpop.xlane.xlu0 %1072
        %v1074 = vsub.f32 %v1069, %v1073
        %v1075 = vmul.f32 %v1074, 1.442695
        %v1076 = vpow.pop %v1075
        %v1077 = vsel %vm394, %v1076, 0.0
        %1078 = vadd.xlane.f32.xlu0 %v1077
        %v1079 = vpop.xlane.xlu0 %1078
        %v1080 = vrcp.pop %v1079
        %v1081 = vmul.f32 %v1079, %v1080
        %v1082 = vsub.f32 1.0, %v1081
        %v1083 = vmul.f32 %v1080, %v1082
        %v1084 = vadd.f32 %v1080, %v1083
        %vm1085 = vweird.f32 %v1079
        %vm1086 = vweird.f32 %v1080
        %vm1087 = vmor %vm1085, %vm1086
        %v1088 = vsel %vm1087, %v1080, %v1084
        %v1089 = vand.u32 2147483647, %v1079
        %vm1090 = vcmp.eq.f32.partialorder %v1089, 8.507059e+37
        %v1091 = vand.u32 %v1079, 2147483648
        %v1092 = vor.u32 1.1754944e-38, %v1091
        %v1093 = vsel %vm1090, %v1092, %v1088
        %v1094 = vmul.f32 %v1076, %v1093
        %v1095 = vpack.c.bf16 %v1094, %v1094
        %1096 = vrot.lane.b32.xlu0 %v946, 48
        %v1097 = vpop.permute.xlu0 %1096
        %v1099 = vsel %vm394, %v1095, 0
        %v1102 = vsel %vm451, %v1097, 0
        %1104 = vmatpush.bf16.msra.mxu0 0
        %1105 = vmatpush.bf16.msra.mxu0 0
        %1106 = vmatpush.bf16.msra.mxu0 0
        %1107 = vmatpush.bf16.msra.mxu0 0
        %1108 = vmatpush.bf16.msra.mxu0 0
        %1109 = vmatpush.bf16.msra.mxu0 0
        %1110 = vmatpush.bf16.msra.mxu0 0
        %1111 = vmatpush.bf16.msra.mxu0 %v1102
        %1112 = vmatmul.bf16.gmra.mxu0 %v1099
        %v1113 = vpop.f32.mrf.mxu0
        %v1114 = vadd.f32 0.0, %v1113
        %v1115 = vpop.f32.mrf.mxu0
        %1116 = vdwg.mxu0
        %1117 = vrot.lane.b32.xlu0 %v891, 104
        %v1118 = vpop.permute.xlu0 %1117
        %1119 = vrot.lane.b32.xlu0 %v891, 72
        %v1120 = vpop.permute.xlu0 %1119
        %v1121 = vsel %vm394, %v1118, 0
        %v1123 = vsel %vm394, %v1120, 0
        %1125 = vmatpush.xpose.msra.mxu0 0.0
        %1126 = vmatpush.xpose.msra.mxu0 0.0
        %1127 = vmatpush.xpose.msra.mxu0 0.0
        %1128 = vmatpush.xpose.msra.mxu0 0.0
        %1129 = vmatpush.xpose.msra.mxu0 0.0
        %1130 = vmatpush.xpose.msra.mxu0 0.0
        %1131 = vmatpush.xpose.msra.mxu0 0.0
        %1132 = vmatpush.xpose.msra.mxu0 0.0
        %1133 = vmatpush.xpose.msra.mxu0 0.0
        %1134 = vmatpush.xpose.msra.mxu0 0.0
        %1135 = vmatpush.xpose.msra.mxu0 0.0
        %1136 = vmatpush.xpose.msra.mxu0 0.0
        %1137 = vmatpush.xpose.msra.mxu0 0.0
        %1138 = vmatpush.xpose.msra.mxu0 0.0
        %1139 = vmatpush.xpose.msra.mxu0 0.0
        %1140 = vmatpush.xpose.msra.mxu0 %v1123
        %1141 = vmatmul.f32.gmra.mxu0 %v1121
        %v1142 = vpop.f32.mrf.mxu0
        %v1143 = vadd.f32 %v332, %v1142
        %1144 = vdwg.mxu0
        %v1145 = vsel %vm394, %v1143, -inf
        %1146 = vmax.xlane.f32.xlu0 %v1145
        %v1147 = vpop.xlane.xlu0 %1146
        %v1148 = vsub.f32 %v1143, %v1147
        %v1149 = vmul.f32 %v1148, 1.442695
        %v1150 = vpow.pop %v1149
        %v1151 = vsel %vm394, %v1150, 0.0
        %1152 = vadd.xlane.f32.xlu0 %v1151
        %v1153 = vpop.xlane.xlu0 %1152
        %v1154 = vrcp.pop %v1153
        %v1155 = vmul.f32 %v1153, %v1154
        %v1156 = vsub.f32 1.0, %v1155
        %v1157 = vmul.f32 %v1154, %v1156
        %v1158 = vadd.f32 %v1154, %v1157
        %vm1159 = vweird.f32 %v1153
        %vm1160 = vweird.f32 %v1154
        %vm1161 = vmor %vm1159, %vm1160
        %v1162 = vsel %vm1161, %v1154, %v1158
        %v1163 = vand.u32 2147483647, %v1153
        %vm1164 = vcmp.eq.f32.partialorder %v1163, 8.507059e+37
        %v1165 = vand.u32 %v1153, 2147483648
        %v1166 = vor.u32 1.1754944e-38, %v1165
        %v1167 = vsel %vm1164, %v1166, %v1162
        %v1168 = vmul.f32 %v1150, %v1167
        %v1169 = vpack.c.bf16 %v1168, %v1168
        %1170 = vrot.lane.b32.xlu0 %v946, 40
        %v1171 = vpop.permute.xlu0 %1170
        %v1173 = vsel %vm394, %v1169, 0
        %v1176 = vsel %vm451, %v1171, 0
        %1178 = vmatpush.bf16.msra.mxu0 0
        %1179 = vmatpush.bf16.msra.mxu0 0
        %1180 = vmatpush.bf16.msra.mxu0 0
        %1181 = vmatpush.bf16.msra.mxu0 0
        %1182 = vmatpush.bf16.msra.mxu0 0
        %1183 = vmatpush.bf16.msra.mxu0 0
        %1184 = vmatpush.bf16.msra.mxu0 0
        %1185 = vmatpush.bf16.msra.mxu0 %v1176
        %1186 = vmatmul.bf16.gmra.mxu0 %v1173
        %v1187 = vpop.f32.mrf.mxu0
        %v1188 = vadd.f32 0.0, %v1187
        %v1189 = vpop.f32.mrf.mxu0
        %1190 = vdwg.mxu0
        %1192 = vrot.lane.b32.xlu0 %v1040, 8
        %v1193 = vpop.permute.xlu0 %1192
        %1196 = vrot.lane.b32.xlu0 %v1114, 16
        %v1197 = vpop.permute.xlu0 %1196
        %1200 = vrot.lane.b32.xlu0 %v1188, 24
        %v1201 = vpop.permute.xlu0 %1200
        %v1203 = vsel %vm394, %v966, %v1193
        %v1204 = vsel %vm703, %v1203, %v1197
        %v1205 = vsel %vm705, %v1204, %v1201
        %v1206 = vpack.c.bf16 %v1205, %v1205
        %s1207 = scalar_lea.vmem %s4, 16
        %v1208 = vld [vmem:[%s1207] sm:$0xf]
        %v1209 = vld [vmem:[%s1207 + $0x4] sm:$0xf]
        %v1210 = vld [vmem:[%s1207 + $0x8] sm:$0xf]
        %v1211 = vld [vmem:[%s1207 + $0xc] sm:$0xf]
        %v1216 = vunpack.c.l.b16 %v1208
        %v1217 = vunpack.c.l.b16 %v1209
        %v1218 = vunpack.c.l.b16 %v1210
        %v1219 = vunpack.c.l.b16 %v1211
        %v1220 = vpack.c.b16 %v1217, %v1216
        %v1221 = vpack.c.b16 %v1219, %v1218
        %v1225 = vsel %vm334, %v1206, 0
        %1227 = vmatpush.bf16.msra.mxu0 0
        %1228 = vmatpush.bf16.msra.mxu0 0
        %1229 = vmatpush.bf16.msra.mxu0 0
        %1230 = vmatpush.bf16.msra.mxu0 0
        %1231 = vmatpush.bf16.msra.mxu0 0
        %1232 = vmatpush.bf16.msra.mxu0 0
        %1233 = vmatpush.bf16.msra.mxu0 %v1221
        %1234 = vmatpush.bf16.msra.mxu0 %v1220
        %1235 = vmatmul.bf16.gmra.mxu0 %v1225
        %v1236 = vpop.f32.mrf.mxu0
        %v1237 = vadd.f32 0.0, %v1236
        %v1238 = vpop.f32.mrf.mxu0
        %1239 = vdwg.mxu0
        %v1240 = vadd.f32 %v842, %v1237
        %v1241 = vmul.f32 %v1240, %v1240
        %v1242 = vsel %vm334, %v1241, 0.0
        %1243 = vadd.xlane.f32.xlu0 %v1242
        %v1244 = vpop.xlane.xlu0 %1243
        %v1245 = vmul.f32 %v1244, %v344
        %v1246 = vadd.f32 %v1245, 1e-06
        %v1247 = vrsqrt.pop %v1246
        %v1248 = vmul.f32 %v1247, %v1246
        %v1249 = vmul.f32 %v1248, %v1247
        %v1250 = vmul.f32 0.5, %v1249
        %v1251 = vsub.f32 1.5, %v1250
        %v1252 = vmul.f32 %v1247, %v1251
        %vm1253 = vweird.f32 %v1246
        %vm1254 = vweird.f32 %v1247
        %vm1255 = vmor %vm1253, %vm1254
        %v1256 = vsel %vm1255, %v1247, %v1252
        %v1257 = vmul.f32 %v1240, %v1256
        %v1258 = vpack.c.bf16 %v1257, %v1257
        %s1259 = scalar_lea.vmem %s5, 16
        %v1260 = vld [vmem:[%s1259] sm:$0xf]
        %v1261 = vld [vmem:[%s1259 + $0x4] sm:$0xf]
        %v1262 = vld [vmem:[%s1259 + $0x8] sm:$0xf]
        %v1263 = vld [vmem:[%s1259 + $0xc] sm:$0xf]
        %v1268 = vunpack.c.l.b16 %v1260
        %v1269 = vunpack.c.l.b16 %v1261
        %v1270 = vunpack.c.l.b16 %v1262
        %v1271 = vunpack.c.l.b16 %v1263
        %v1272 = vpack.c.b16 %v1269, %v1268
        %v1273 = vpack.c.b16 %v1271, %v1270
        %v1277 = vsel %vm334, %v1258, 0
        %1279 = vmatpush.bf16.msra.mxu0 0
        %1280 = vmatpush.bf16.msra.mxu0 0
        %1281 = vmatpush.bf16.msra.mxu0 0
        %1282 = vmatpush.bf16.msra.mxu0 0
        %1283 = vmatpush.bf16.msra.mxu0 0
        %1284 = vmatpush.bf16.msra.mxu0 0
        %1285 = vmatpush.bf16.msra.mxu0 %v1273
        %1286 = vmatpush.bf16.msra.mxu0 %v1272
        %1287 = vmatmul.bf16.gmra.mxu0 %v1277
        %v1288 = vpop.f32.mrf.mxu0
        %v1289 = vadd.f32 0.0, %v1288
        %v1290 = vpop.f32.mrf.mxu0
        %1291 = vdwg.mxu0
        %v1292 = vmax.f32 %v1289, 0.0
        %v1293 = vpack.c.bf16 %v1292, %v1292
        %s1294 = scalar_lea.vmem %s6, 32
        %v1295 = vld [vmem:[%s1294] sm:$0xf]
        %v1296 = vld [vmem:[%s1294 + $0x4] sm:$0xf]
        %v1297 = vld [vmem:[%s1294 + $0x8] sm:$0xf]
        %v1298 = vld [vmem:[%s1294 + $0xc] sm:$0xf]
        %v1299 = vld [vmem:[%s1294 + $0x10] sm:$0xf]
        %v1300 = vld [vmem:[%s1294 + $0x14] sm:$0xf]
        %v1301 = vld [vmem:[%s1294 + $0x18] sm:$0xf]
        %v1302 = vld [vmem:[%s1294 + $0x1c] sm:$0xf]
        %v1311 = vunpack.c.l.b16 %v1295
        %v1312 = vunpack.c.l.b16 %v1296
        %v1313 = vunpack.c.l.b16 %v1297
        %v1314 = vunpack.c.l.b16 %v1298
        %v1315 = vunpack.c.l.b16 %v1299
        %v1316 = vunpack.c.l.b16 %v1300
        %v1317 = vunpack.c.l.b16 %v1301
        %v1318 = vunpack.c.l.b16 %v1302
        %v1319 = vpack.c.b16 %v1312, %v1311
        %v1320 = vpack.c.b16 %v1314, %v1313
        %v1321 = vpack.c.b16 %v1316, %v1315
        %v1322 = vpack.c.b16 %v1318, %v1317
        %v1328 = vsel %vm825, %v1293, 0
        %1330 = vmatpush.bf16.msra.mxu0 0
        %1331 = vmatpush.bf16.msra.mxu0 0
        %1332 = vmatpush.bf16.msra.mxu0 0
        %1333 = vmatpush.bf16.msra.mxu0 0
        %1334 = vmatpush.bf16.msra.mxu0 %v1322
        %1335 = vmatpush.bf16.msra.mxu0 %v1321
        %1336 = vmatpush.bf16.msra.mxu0 %v1320
        %1337 = vmatpush.bf16.msra.mxu0 %v1319
        %1338 = vmatmul.bf16.gmra.mxu0 %v1328
        %v1339 = vpop.f32.mrf.mxu0
        %v1340 = vadd.f32 0.0, %v1339
        %v1341 = vpop.f32.mrf.mxu0
        %1342 = vdwg.mxu0
        %v1343 = vadd.f32 %v1240, %v1340
        %v1344 = vmul.f32 %v1343, %v1343
        %v1345 = vsel %vm334, %v1344, 0.0
        %1346 = vadd.xlane.f32.xlu0 %v1345
        %v1347 = vpop.xlane.xlu0 %1346
        %v1348 = vmul.f32 %v1347, %v344
        %v1349 = vadd.f32 %v1348, 1e-06
        %v1350 = vrsqrt.pop %v1349
        %v1351 = vmul.f32 %v1350, %v1349
        %v1352 = vmul.f32 %v1351, %v1350
        %v1353 = vmul.f32 0.5, %v1352
        %v1354 = vsub.f32 1.5, %v1353
        %v1355 = vmul.f32 %v1350, %v1354
        %vm1356 = vweird.f32 %v1349
        %vm1357 = vweird.f32 %v1350
        %vm1358 = vmor %vm1356, %vm1357
        %v1359 = vsel %vm1358, %v1350, %v1355
        %v1360 = vmul.f32 %v1343, %v1359
        %v1361 = vld [vmem:[%s7] sm:$0x1]
        %v1363 = vperm.slane %v1361, 0
        %v1365 = vmul.f32 %v1360, %v1363
        %1366 = vst.msk [vmem:[%s307] sm:$0xff] %vm334, %v1365
        %s1367 = sand.u32 %s208, 1
        %s1368 = scalar_lea.sflag [#allocation3], %s1367
        %s1369 = sand.u32 %s208, 1
        %s1370 = smul.addr %s1369, 8
        %s1371 = scalar_lea.vmem [#allocation2], %s1370
        // Predicated region
        $region53: #{t5_encoder_forward.1} parent=51 // pred_check
          %p1372 = pneg %p218
        $region54: #{t5_encoder_forward.1} parent=51 // pred_check_branch
          %1374 = sbr.rel (%p1372) target = $region56
        $region55: #{t5_encoder_forward.1} parent=51 // pred_region
          %1376 = vsyncadd %s1368, 0
          %s1377 = smul.addr %s22, 8
          %s1378 = scalar_lea.hbm %s8, %s1377
          %s1380 = sshll.u32 %s1371, 4
          %s1381 = int_to_ptr.vmem [resolvable:$true] %s1380
          %s1382 = sshll.u32 %s1378, 4
          %s1383 = int_to_ptr.hbm [resolvable:$true] %s1382
          %1385 = dma.vmem_to_hbm [thread:$0]  %s1381, 128, %s1383, %s1368
        $region56: #{t5_encoder_forward.1} parent=51 // pred_fallthru
          _
      $region52: #{t5_encoder_forward.1} parent=5 // pred_fallthru
        _
      %p1386 = scmp.le.s32.totalorder 2, %s17
      // Predicated region
      $region57: #{t5_encoder_forward.1} parent=5 // pred_check
        %p1387 = pneg %p1386
      $region58: #{t5_encoder_forward.1} parent=5 // pred_check_branch
        %1389 = sbr.rel (%p1387) target = $region60
      $region59: #{t5_encoder_forward.1} parent=5 // pred_region
        %s1390 = ssub.s32 %s17, 2
        // Predicated region
        $region61: #{t5_encoder_forward.1} parent=59 // pred_check
          %p1391 = pneg %p224
        $region62: #{t5_encoder_forward.1} parent=59 // pred_check_branch
          %1393 = sbr.rel (%p1391) target = $region64
        $region63: #{t5_encoder_forward.1} parent=59 // pred_region
          %s1394 = sand.u32 %s209, 1
          %s1395 = scalar_lea.sflag [#allocation3], %s1394
          %s1396 = sand.u32 %s209, 1
          %s1397 = smul.addr %s1396, 8
          %s1398 = scalar_lea.vmem [#allocation2], %s1397
          %1400 = dma.done %s1395, 128
        $region64: #{t5_encoder_forward.1} parent=59 // pred_fallthru
          _
      $region60: #{t5_encoder_forward.1} parent=5 // pred_fallthru
        _
    $region6: #{t5_encoder_forward.1} parent=1 // loop_footer
      %s21 = sadd.s32 1, %s17
    $region7: #{t5_encoder_forward.1} parent=1 // loop_footer_branch
      %16 = sbr.rel target = $region3
    $region8: #{t5_encoder_forward.1} parent=1 // loop_exit
      _
    %1401 = vsyncpa [#allocation3], 1
    %s1402 = scalar_lea.sflag [#allocation3], 1
    %1403 = vsyncpa %s1402, 1

</llo_original>
